<compile_context>
chip_gen: v6e
topology: v6e:2x2x1
jax: 0.10.0
libtpu: 0.0.40
codegen_flags: <defaults>
</compile_context>

<pallas_src>
import math

import jax
import jax.numpy as jnp
from jax.experimental import pallas as pl
from jax.experimental.pallas import tpu as pltpu

BN_EPS = 1e-5
BN_WEIGHT = 1.0       # bn.weight.data.fill_(1)
BN_BIAS = 0.1         # bn.bias.data.fill_(0.1)

# Scoped-VMEM cap: per-tile working set at TM=1024, cp=128, Ncat=384 is a few MiB
# (double-buffered bf16 x/z + the (TM, Ncat) f32 accumulator), comfortably under
# this on v5e/v6e (128 MiB) and v7x (64 MiB).
VMEM_LIMIT_BYTES = 32 * 1024 * 1024
TARGET_TILE_ROWS = 1024               # ~85% of HBM roofline per the tiling data


def _pad128(n):
    return ((n + 127) // 128) * 128


def _choose_tile_rows(M, T):
    """Rows per tile.  Invariants:
      * tm divides M and is a multiple of T -> the dilated tap (roll + t%T mask)
        never wraps across a node boundary inside a tile,
      * tm is a multiple of 16 (bf16 interlayer tiles) unless it is the full extent,
      * the grid has >= 2 steps (ideally an even count >= 4) so v7x's two
        TensorCores and the DMA pipeline are used,
      * tm is as close to TARGET_TILE_ROWS as those constraints allow.
    """
    n_nodes = M // T
    cands = [tn * T for tn in range(1, n_nodes + 1) if n_nodes % tn == 0]
    pool = [tm for tm in cands if tm % 16 == 0 or tm == M]
    if not pool:
        pool = [tm for tm in cands if tm % 8 == 0 or tm == M]

    def score(tm):
        nt = M // tm
        return (0 if nt >= 2 else 1,                       # hard-prefer >= 2 grid steps
                0 if (nt >= 4 and nt % 2 == 0) else 1,     # prefer even count >= 4
                abs(tm - TARGET_TILE_ROWS))
    return min(pool, key=score)


# ------------------------------- kernels ---------------------------------------
def make_glu_pass1_kernel(*, prologue, k2, need_ds, T, d, cp_in, cp_out):
    """Pass-1 kernel for one GatedLinearUnits layer.

    refs: [x, (scale, shift)?, W, b] -> [z, stats]
      x     : (TM, cp_in)  f32 (raw input) or bf16 (previous layer's pre-BN z)
      scale : (1, cp_in)   f32 previous layer's BN scale   (only if prologue)
      shift : (1, cp_in)   f32 previous layer's BN shift   (only if prologue)
      W     : (K, Ncat)   bf16 [conv | gate | downsample] x [current | older tap]
      b     : (1, Ncat)    f32 packed biases
      z     : (TM, cp_out) bf16 gated pre-BN output of this layer
      stats : (8, cp_out)  f32 row0 = sum(z), row1 = sum(z*z) (computed on f32 z)
    """
    # TODO(synk): activate=True (tanh on the conv branch) is unused by TimeBlock and
    # intentionally not implemented here.
    def kernel(*refs):
        if prologue:
            x_ref, sc_ref, sh_ref, w_ref, b_ref, z_ref, st_ref = refs
        else:
            x_ref, w_ref, b_ref, z_ref, st_ref = refs

        x = x_ref[...].astype(jnp.float32)                  # bf16 interlayer z -> f32
        if prologue:                                        # fused BN+ReLU of prev layer
            x = jnp.maximum(x * sc_ref[...] + sh_ref[...], 0.0)

        xb = x.astype(jnp.bfloat16)                         # MXU operand
        if k2:
            # causal dilated tap x[t-d]; rows with t < d see the zero left-padding.
            xs = pltpu.roll(x, shift=d, axis=0)             # row i <- row i-d (in-tile)
            t_ok = (jax.lax.broadcasted_iota(jnp.int32, (x.shape[0], 1), 0) % T) >= d
            xs = jnp.where(t_ok, xs, 0.0)                   # (TM,1) mask broadcast
            # two dots on 128-aligned W slices, accumulated in f32 (no lane concat)
            acc = (jnp.dot(xb, w_ref[0:cp_in, :],
                           preferred_element_type=jnp.float32)
                   + jnp.dot(xs.astype(jnp.bfloat16), w_ref[cp_in:2 * cp_in, :],
                             preferred_element_type=jnp.float32)
                   + b_ref[...])
        else:
            acc = jnp.dot(xb, w_ref[...],
                          preferred_element_type=jnp.float32) + b_ref[...]

        conv = acc[:, :cp_out]
        gate = jax.nn.sigmoid(acc[:, cp_out:2 * cp_out])
        res = acc[:, 2 * cp_out:3 * cp_out] if need_ds else x
        z = conv * gate + res * (1.0 - gate)                # f32

        zsum = jnp.sum(z, axis=0, keepdims=True)
        zsq = jnp.sum(z * z, axis=0, keepdims=True)
        st_ref[...] = jnp.concatenate(                      # one full-tile store
            [zsum, zsq, jnp.zeros((6, cp_out), jnp.float32)], axis=0)
        z_ref[...] = z.astype(jnp.bfloat16)                 # halve interlayer HBM bytes

    return kernel


def make_bn_relu_kernel(c_out):
    """Final-layer BatchNorm apply + ReLU; writes only the real c_out channels."""
    def kernel(z_ref, sc_ref, sh_ref, o_ref):
        y = jnp.maximum(z_ref[...].astype(jnp.float32) * sc_ref[...] + sh_ref[...], 0.0)
        o_ref[...] = y[:, :c_out]
    return kernel


# --------------------------- per-layer wrappers ---------------------------------
def _glu_pass1(h, sc, sh, layer, T, tile_m):
    M, cp_in = h.shape
    cp_out = layer["cp_out"]
    K, ncat = layer["W"].shape
    ntiles = M // tile_m
    prologue = sc is not None

    kernel = make_glu_pass1_kernel(
        prologue=prologue, k2=(layer["k"] == 2), need_ds=layer["need_ds"],
        T=T, d=layer["d"], cp_in=cp_in, cp_out=cp_out)

    in_specs = [pl.BlockSpec((tile_m, cp_in), lambda i: (i, 0))]
    inputs = [h]
    if prologue:
        in_specs += [pl.BlockSpec((1, cp_in), lambda i: (0, 0)),
                     pl.BlockSpec((1, cp_in), lambda i: (0, 0))]
        inputs += [sc, sh]
    in_specs += [pl.BlockSpec((K, ncat), lambda i: (0, 0)),
                 pl.BlockSpec((1, ncat), lambda i: (0, 0))]
    inputs += [layer["W"], layer["b"]]

    z, stats = pl.pallas_call(
        kernel,
        grid=(ntiles,),
        in_specs=in_specs,
        out_specs=(pl.BlockSpec((tile_m, cp_out), lambda i: (i, 0)),
                   pl.BlockSpec((8, cp_out), lambda i: (i, 0))),
        out_shape=(jax.ShapeDtypeStruct((M, cp_out), jnp.bfloat16),
                   jax.ShapeDtypeStruct((ntiles * 8, cp_out), jnp.float32)),
        compiler_params=pltpu.CompilerParams(
            dimension_semantics=("parallel",),
            vmem_limit_bytes=VMEM_LIMIT_BYTES),
    )(*inputs)

    # combine per-tile partial stats -> training-mode BN scale/shift (biased var)
    st = stats.reshape(ntiles, 8, cp_out)
    mean = jnp.sum(st[:, 0, :], axis=0) / M
    var = jnp.maximum(jnp.sum(st[:, 1, :], axis=0) / M - mean * mean, 0.0)
    new_sc = (BN_WEIGHT * jax.lax.rsqrt(var + BN_EPS))[None, :]
    new_sh = (BN_BIAS - mean * new_sc[0])[None, :]
    return z, new_sc, new_sh


def _bn_relu(z, sc, sh, c_out, tile_m):
    M, cp = z.shape
    ntiles = M // tile_m
    return pl.pallas_call(
        make_bn_relu_kernel(c_out),
        grid=(ntiles,),
        in_specs=[pl.BlockSpec((tile_m, cp), lambda i: (i, 0)),
                  pl.BlockSpec((1, cp), lambda i: (0, 0)),
                  pl.BlockSpec((1, cp), lambda i: (0, 0))],
        out_specs=pl.BlockSpec((tile_m, c_out), lambda i: (i, 0)),
        out_shape=jax.ShapeDtypeStruct((M, c_out), jnp.float32),
        compiler_params=pltpu.CompilerParams(
            dimension_semantics=("parallel",),
            vmem_limit_bytes=VMEM_LIMIT_BYTES),
    )(z, sc, sh)


def time_block_forward(x, layers):
    """x: (B, N, T, F) exactly like the PyTorch TimeBlock input; the NCHW permutes
    are absorbed by the channels-last layout."""
    B, N, T, F = x.shape
    M = B * N * T
    tile_m = _choose_tile_rows(M, T)

    cp0 = layers[0]["cp_in"]
    h = jnp.zeros((M, cp0), jnp.float32).at[:, :F].set(x.reshape(M, F))  # lane-dense pad

    sc = sh = None
    for layer in layers:
        h, sc, sh = _glu_pass1(h, sc, sh, layer, T, tile_m)

    c_out = layers[-1]["cout"]
    y = _bn_relu(h, sc, sh, c_out, tile_m)          # already only the real channels
    return y.reshape(B, N, T, c_out)


# ----------------------- parameter init & packing (deterministic) ----------------
# TODO(synk): weight_norm reparameterization (w = g*v/||v||) is an identity at init
# time; effective conv weights are initialized directly (xavier_uniform, gain sqrt(2)).

def _xavier_uniform(key, cout, cin, kw, gain):
    fan_in, fan_out = cin * kw, cout * kw
    bound = gain * math.sqrt(6.0 / (fan_in + fan_out))
    return jax.random.uniform(key, (cout, cin, kw), jnp.float32, -bound, bound)


def init_glu_params(key, cin, cout, kernel_size):
    gain = math.sqrt(2.0)
    kc, kg, kd = jax.random.split(key, 3)
    wc = _xavier_uniform(kc, cout, cin, kernel_size, gain)   # (Cout, Cin, k)
    wg = _xavier_uniform(kg, cout, cin, kernel_size, gain)
    p = {"bc": jnp.full((1, cout), 0.1, jnp.float32),
         "bg": jnp.full((1, cout), 0.1, jnp.float32)}
    if kernel_size == 2:
        p["wc0"], p["wc1"] = wc[:, :, 0].T, wc[:, :, 1].T    # (Cin, Cout) per tap
        p["wg0"], p["wg1"] = wg[:, :, 0].T, wg[:, :, 1].T
    else:
        p["wc0"] = jnp.zeros((cin, cout), jnp.float32)       # only used by the reference
        p["wc1"] = wc[:, :, 0].T
        p["wg0"] = jnp.zeros((cin, cout), jnp.float32)
        p["wg1"] = wg[:, :, 0].T
    if cin != cout:
        wd = _xavier_uniform(kd, cout, cin, 1, gain)         # 1x1 downsample conv
        p["wd"] = wd[:, :, 0].T
        p["bd"] = jnp.full((1, cout), 0.1, jnp.float32)
    return p


def pack_glu_params(p, cin, cout, k, d):
    """Zero-pad channels to multiples of 128 and pack [conv | gate | downsample]
    along N and [current tap | older tap] along K.  Weights stored as bf16."""
    cp_in, cp_out = _pad128(cin), _pad128(cout)
    need_ds = "wd" in p
    nblk = 3 if need_ds else 2
    K = cp_in * (2 if k == 2 else 1)
    W = jnp.zeros((K, nblk * cp_out), jnp.float32)
    b = jnp.zeros((1, nblk * cp_out), jnp.float32)

    def put(W, w, k_off, n_blk):
        return W.at[k_off:k_off + cin, n_blk * cp_out:n_blk * cp_out + cout].set(w)

    W = put(W, p["wc1"], 0, 0)                 # current tap
    W = put(W, p["wg1"], 0, 1)
    if k == 2:
        W = put(W, p["wc0"], cp_in, 0)         # older (dilated) tap
        W = put(W, p["wg0"], cp_in, 1)
    if need_ds:
        W = put(W, p["wd"], 0, 2)              # 1x1 downsample (current tap only)
        b = b.at[0, 2 * cp_out:2 * cp_out + cout].set(p["bd"][0])
    b = b.at[0, :cout].set(p["bc"][0])
    b = b.at[0, cp_out:cp_out + cout].set(p["bg"][0])

    return {"W": W.astype(jnp.bfloat16), "b": b, "k": k, "d": d,
            "cin": cin, "cout": cout, "cp_in": cp_in, "cp_out": cp_out,
            "need_ds": need_ds, "raw": p}


def time_block_init(key, in_channels, out_channels, kernel_size=2,
                    nhid_channels=128, layer=3):
    keys = jax.random.split(key, layer)
    layers = []
    for i in range(layer):
        if i == 0:
            cin, cout, k, d = in_channels, nhid_channels, 1, 1
        elif i == layer - 1:
            cin, cout, k, d = nhid_channels, out_channels, 1, 1
        else:
            cin, cout, k, d = nhid_channels, nhid_channels, kernel_size, 2 ** i
        p = init_glu_params(keys[i], cin, cout, k)
        layers.append(pack_glu_params(p, cin, cout, k, d))
    return layers


# --------------------------- pure-JAX reference ----------------------------------
def _glu_ref(x, p, k, d):
    """GatedLinearUnits forward (training-mode BatchNorm).  Mirrors the kernel's
    numerics: bf16 matmul operands, and the pre-BN activation rounded to bf16
    before the BN apply (the kernel stores interlayer z in bf16)."""
    B, N, T, cin = x.shape
    M = B * N * T
    xc = x.reshape(M, cin)
    if k == 2:
        xs = jnp.pad(x, ((0, 0), (0, 0), (d, 0), (0, 0)))[:, :, :T, :].reshape(M, cin)
    else:
        xs = jnp.zeros_like(xc)
    bf = jnp.bfloat16
    dot = lambda a, w: jnp.dot(a.astype(bf), w.astype(bf),
                               preferred_element_type=jnp.float32)
    conv = dot(xc, p["wc1"]) + dot(xs, p["wc0"]) + p["bc"][0]
    gate = jax.nn.sigmoid(dot(xc, p["wg1"]) + dot(xs, p["wg0"]) + p["bg"][0])
    res = (dot(xc, p["wd"]) + p["bd"][0]) if "wd" in p else xc
    out = conv * gate + res * (1.0 - gate)
    mean = out.mean(axis=0)
    var = jnp.maximum((out * out).mean(axis=0) - mean * mean, 0.0)
    scale = BN_WEIGHT * jax.lax.rsqrt(var + BN_EPS)
    shift = BN_BIAS - mean * scale
    out_bf = out.astype(bf).astype(jnp.float32)          # kernel stores z in bf16
    out = jnp.maximum(out_bf * scale + shift, 0.0)
    return out.reshape(B, N, T, -1)


if __name__ == "__main__":
    B, N, T = 2, 4, 8
    in_channels, out_channels, nhid, ksize, nlayer = 4, 8, 32, 2, 3

    key = jax.random.PRNGKey(0)
    xkey, pkey = jax.random.split(key)
    x = jax.random.normal(xkey, (B, N, T, in_channels), jnp.float32)

    layers = time_block_init(pkey, in_channels, out_channels,
                             kernel_size=ksize, nhid_channels=nhid, layer=nlayer)

    fwd = jax.jit(lambda xx: time_block_forward(xx, layers))
    out = jax.block_until_ready(fwd(x))
    assert out.shape == (B, N, T, out_channels), out.shape

    ref = x
    for layer in layers:
        ref = _glu_ref(ref, layer["raw"], layer["k"], layer["d"])

    # bf16 matmuls + bf16 interlayer z + 3 stacked BN layers -> loose-ish tolerance;
    # real bugs (wrong tap shift, wrong slice, swapped gates) give O(0.1-1) errors.
    assert jnp.allclose(out, ref, atol=5e-2, rtol=5e-2), \
        float(jnp.max(jnp.abs(out - ref)))

    print("KERNEL_OK")
</pallas_src>

<mosaic_0001>
module attributes {stable_mosaic.version = 11 : i64} {
  func.func @kernel(%arg0: i32, %arg1: memref<16x128xf32, #tpu.memory_space<vmem>>, %arg2: memref<128x384xbf16, #tpu.memory_space<vmem>>, %arg3: memref<1x384xf32, #tpu.memory_space<vmem>>, %arg4: memref<16x128xbf16, #tpu.memory_space<vmem>>, %arg5: memref<8x128xf32, #tpu.memory_space<vmem>>) attributes {dimension_semantics = [#tpu.dimension_semantics<parallel>], iteration_bounds = array<i64: 4>, scalar_prefetch = 0 : i64, scratch_operands = 0 : i64, tpu.core_type = #tpu.core_type<tc>, window_params = [{transform_indices = @transform_0, window_bounds = array<i64: 16, 128>}, {pipeline_mode = #tpu.pipeline_mode<synchronous>, transform_indices = @transform_1, window_bounds = array<i64: 128, 384>}, {pipeline_mode = #tpu.pipeline_mode<synchronous>, transform_indices = @transform_2, window_bounds = array<i64: 1, 384>}, {transform_indices = @transform_3, window_bounds = array<i64: 16, 128>}, {transform_indices = @transform_4, window_bounds = array<i64: 8, 128>}]} {
    %c0 = arith.constant 0 : index
    %c0_0 = arith.constant 0 : index
    %0 = vector.load %arg1[%c0, %c0_0] : memref<16x128xf32, #tpu.memory_space<vmem>>, vector<16x128xf32>
    %1 = arith.truncf %0 : vector<16x128xf32> to vector<16x128xbf16>
    %c0_1 = arith.constant 0 : index
    %c0_2 = arith.constant 0 : index
    %2 = vector.load %arg2[%c0_1, %c0_2] : memref<128x384xbf16, #tpu.memory_space<vmem>>, vector<128x384xbf16>
    %cst = arith.constant dense<0.000000e+00> : vector<16x384xf32>
    %3 = tpu.matmul %1, %2, %cst {dimension_numbers = #tpu.dot_dimension_numbers<[1], [0], [0], [1], [0, 0, 1, 1], [], []>} : vector<16x128xbf16>, vector<128x384xbf16>, vector<16x384xf32> -> vector<16x384xf32>
    %c0_3 = arith.constant 0 : index
    %c0_4 = arith.constant 0 : index
    %4 = vector.load %arg3[%c0_3, %c0_4] : memref<1x384xf32, #tpu.memory_space<vmem>>, vector<1x384xf32>
    %5 = vector.broadcast %4 : vector<1x384xf32> to vector<16x384xf32>
    %6 = arith.addf %3, %5 : vector<16x384xf32>
    %7 = vector.extract_strided_slice %6 {offsets = [0, 0], sizes = [16, 128], strides = [1, 1]} : vector<16x384xf32> to vector<16x128xf32>
    %8 = vector.extract_strided_slice %6 {offsets = [0, 128], sizes = [16, 128], strides = [1, 1]} : vector<16x384xf32> to vector<16x128xf32>
    %9 = arith.negf %8 : vector<16x128xf32>
    %10 = math.exp %9 : vector<16x128xf32>
    %cst_5 = arith.constant 1.000000e+00 : f32
    %11 = vector.broadcast %cst_5 : f32 to vector<16x128xf32>
    %12 = arith.addf %11, %10 : vector<16x128xf32>
    %13 = arith.divf %11, %12 : vector<16x128xf32>
    %14 = vector.extract_strided_slice %6 {offsets = [0, 256], sizes = [16, 128], strides = [1, 1]} : vector<16x384xf32> to vector<16x128xf32>
    %15 = arith.mulf %7, %13 : vector<16x128xf32>
    %cst_6 = arith.constant 1.000000e+00 : f32
    %16 = vector.broadcast %cst_6 : f32 to vector<16x128xf32>
    %17 = arith.subf %16, %13 : vector<16x128xf32>
    %18 = arith.mulf %14, %17 : vector<16x128xf32>
    %19 = arith.addf %15, %18 : vector<16x128xf32>
    %cst_7 = arith.constant dense<0.000000e+00> : vector<128xf32>
    %20 = vector.multi_reduction <add>, %19, %cst_7 [0] : vector<16x128xf32> to vector<128xf32>
    %21 = vector.shape_cast %20 : vector<128xf32> to vector<1x128xf32>
    %22 = arith.mulf %19, %19 : vector<16x128xf32>
    %cst_8 = arith.constant dense<0.000000e+00> : vector<128xf32>
    %23 = vector.multi_reduction <add>, %22, %cst_8 [0] : vector<16x128xf32> to vector<128xf32>
    %24 = vector.shape_cast %23 : vector<128xf32> to vector<1x128xf32>
    %cst_9 = arith.constant 0.000000e+00 : f32
    %25 = vector.broadcast %cst_9 : f32 to vector<6x128xf32>
    %26 = tpu.concatenate %21, %24, %25 in 0 : vector<1x128xf32>, vector<1x128xf32>, vector<6x128xf32> -> vector<8x128xf32>
    %c0_10 = arith.constant 0 : index
    %c0_11 = arith.constant 0 : index
    %27 = vector.load %arg5[%c0_10, %c0_11] : memref<8x128xf32, #tpu.memory_space<vmem>>, vector<8x128xf32>
    tpu.vector_store %arg5[%c0_10, %c0_11], %26 {strides = array<i32>} : memref<8x128xf32, #tpu.memory_space<vmem>>, vector<8x128xf32>,
    %28 = arith.truncf %19 : vector<16x128xf32> to vector<16x128xbf16>
    %c0_12 = arith.constant 0 : index
    %c0_13 = arith.constant 0 : index
    %29 = vector.load %arg4[%c0_12, %c0_13] : memref<16x128xbf16, #tpu.memory_space<vmem>>, vector<16x128xbf16>
    tpu.vector_store %arg4[%c0_12, %c0_13], %28 {strides = array<i32>} : memref<16x128xbf16, #tpu.memory_space<vmem>>, vector<16x128xbf16>,
    return
  }
  func.func @transform_0(%arg0: i32) -> (i32, i32) {
    %c0_i32 = arith.constant 0 : i32
    %c0_i32_0 = arith.constant 0 : i32
    return %arg0, %c0_i32 : i32, i32
  }
  func.func @transform_1(%arg0: i32) -> (i32, i32) {
    %c0_i32 = arith.constant 0 : i32
    %c0_i32_0 = arith.constant 0 : i32
    %c0_i32_1 = arith.constant 0 : i32
    return %c0_i32, %c0_i32_0 : i32, i32
  }
  func.func @transform_2(%arg0: i32) -> (i32, i32) {
    %c0_i32 = arith.constant 0 : i32
    %c0_i32_0 = arith.constant 0 : i32
    %c0_i32_1 = arith.constant 0 : i32
    return %c0_i32, %c0_i32_0 : i32, i32
  }
  func.func @transform_3(%arg0: i32) -> (i32, i32) {
    %c0_i32 = arith.constant 0 : i32
    %c0_i32_0 = arith.constant 0 : i32
    return %arg0, %c0_i32 : i32, i32
  }
  func.func @transform_4(%arg0: i32) -> (i32, i32) {
    %c0_i32 = arith.constant 0 : i32
    %c0_i32_0 = arith.constant 0 : i32
    return %arg0, %c0_i32 : i32, i32
  }
}

module attributes {stable_mosaic.version = 11 : i64} {
  func.func @kernel(%arg0: i32, %arg1: memref<16x128xbf16, #tpu.memory_space<vmem>>, %arg2: memref<1x128xf32, #tpu.memory_space<vmem>>, %arg3: memref<1x128xf32, #tpu.memory_space<vmem>>, %arg4: memref<256x256xbf16, #tpu.memory_space<vmem>>, %arg5: memref<1x256xf32, #tpu.memory_space<vmem>>, %arg6: memref<16x128xbf16, #tpu.memory_space<vmem>>, %arg7: memref<8x128xf32, #tpu.memory_space<vmem>>) attributes {dimension_semantics = [#tpu.dimension_semantics<parallel>], iteration_bounds = array<i64: 4>, scalar_prefetch = 0 : i64, scratch_operands = 0 : i64, tpu.core_type = #tpu.core_type<tc>, window_params = [{transform_indices = @transform_0, window_bounds = array<i64: 16, 128>}, {pipeline_mode = #tpu.pipeline_mode<synchronous>, transform_indices = @transform_1, window_bounds = array<i64: 1, 128>}, {pipeline_mode = #tpu.pipeline_mode<synchronous>, transform_indices = @transform_2, window_bounds = array<i64: 1, 128>}, {pipeline_mode = #tpu.pipeline_mode<synchronous>, transform_indices = @transform_3, window_bounds = array<i64: 256, 256>}, {pipeline_mode = #tpu.pipeline_mode<synchronous>, transform_indices = @transform_4, window_bounds = array<i64: 1, 256>}, {transform_indices = @transform_5, window_bounds = array<i64: 16, 128>}, {transform_indices = @transform_6, window_bounds = array<i64: 8, 128>}]} {
    %c0 = arith.constant 0 : index
    %c0_0 = arith.constant 0 : index
    %0 = vector.load %arg1[%c0, %c0_0] : memref<16x128xbf16, #tpu.memory_space<vmem>>, vector<16x128xbf16>
    %1 = arith.extf %0 : vector<16x128xbf16> to vector<16x128xf32>
    %c0_1 = arith.constant 0 : index
    %c0_2 = arith.constant 0 : index
    %2 = vector.load %arg2[%c0_1, %c0_2] : memref<1x128xf32, #tpu.memory_space<vmem>>, vector<1x128xf32>
    %3 = vector.broadcast %2 : vector<1x128xf32> to vector<16x128xf32>
    %4 = arith.mulf %1, %3 : vector<16x128xf32>
    %c0_3 = arith.constant 0 : index
    %c0_4 = arith.constant 0 : index
    %5 = vector.load %arg3[%c0_3, %c0_4] : memref<1x128xf32, #tpu.memory_space<vmem>>, vector<1x128xf32>
    %6 = vector.broadcast %5 : vector<1x128xf32> to vector<16x128xf32>
    %7 = arith.addf %4, %6 : vector<16x128xf32>
    %cst = arith.constant 0.000000e+00 : f32
    %8 = vector.broadcast %cst : f32 to vector<16x128xf32>
    %9 = arith.maximumf %7, %8 : vector<16x128xf32>
    %10 = arith.truncf %9 : vector<16x128xf32> to vector<16x128xbf16>
    %c2_i32 = arith.constant 2 : i32
    %11 = tpu.dynamic_rotate %9 by %c2_i32 dim 0 : vector<16x128xf32>, i32 -> vector<16x128xf32>
    %12 = tpu.iota {dimensions = array<i32: 0>} : vector<16x1xi32>
    %c8_i32 = arith.constant 8 : i32
    %c0_i32 = arith.constant 0 : i32
    %13 = arith.cmpi eq, %c8_i32, %c0_i32 : i32
    %c1_i32 = arith.constant 1 : i32
    %14 = arith.select %13, %c1_i32, %c8_i32 : i32
    %15 = vector.broadcast %14 : i32 to vector<16x1xi32>
    %16 = arith.remsi %12, %15 : vector<16x1xi32>
    %c0_i32_5 = arith.constant 0 : i32
    %17 = vector.broadcast %c0_i32_5 : i32 to vector<16x1xi32>
    %18 = arith.cmpi ne, %16, %17 : vector<16x1xi32>
    %c0_i32_6 = arith.constant 0 : i32
    %19 = vector.broadcast %c0_i32_6 : i32 to vector<16x1xi32>
    %20 = arith.cmpi slt, %16, %19 : vector<16x1xi32>
    %c0_i32_7 = arith.constant 0 : i32
    %21 = arith.cmpi slt, %14, %c0_i32_7 : i32
    %22 = vector.broadcast %21 : i1 to vector<16x1xi1>
    %23 = vector.broadcast %22 : vector<16x1xi1> to vector<16x1xi1>
    %24 = arith.xori %20, %23 : vector<16x1xi1>
    %25 = arith.andi %24, %18 : vector<16x1xi1>
    %26 = vector.broadcast %14 : i32 to vector<16x1xi32>
    %27 = arith.addi %16, %26 : vector<16x1xi32>
    %28 = arith.select %25, %27, %16 : vector<16x1xi1>, vector<16x1xi32>
    %c2_i32_8 = arith.constant 2 : i32
    %29 = vector.broadcast %c2_i32_8 : i32 to vector<16x1xi32>
    %30 = arith.cmpi sge, %28, %29 : vector<16x1xi32>
    %cst_9 = arith.constant 0.000000e+00 : f32
    %31 = vector.shape_cast %30 : vector<16x1xi1> to vector<16x1xi1>
    %32 = vector.broadcast %31 : vector<16x1xi1> to vector<16x128xi1>
    %33 = vector.broadcast %cst_9 : f32 to vector<16x128xf32>
    %34 = arith.select %32, %11, %33 : vector<16x128xi1>, vector<16x128xf32>
    %c0_10 = arith.constant 0 : index
    %c0_11 = arith.constant 0 : index
    %35 = vector.load %arg4[%c0_10, %c0_11] : memref<256x256xbf16, #tpu.memory_space<vmem>>, vector<128x256xbf16>
    %cst_12 = arith.constant dense<0.000000e+00> : vector<16x256xf32>
    %36 = tpu.matmul %10, %35, %cst_12 {dimension_numbers = #tpu.dot_dimension_numbers<[1], [0], [0], [1], [0, 0, 1, 1], [], []>} : vector<16x128xbf16>, vector<128x256xbf16>, vector<16x256xf32> -> vector<16x256xf32>
    %37 = arith.truncf %34 : vector<16x128xf32> to vector<16x128xbf16>
    %c128 = arith.constant 128 : index
    %c0_13 = arith.constant 0 : index
    %38 = vector.load %arg4[%c128, %c0_13] : memref<256x256xbf16, #tpu.memory_space<vmem>>, vector<128x256xbf16>
    %cst_14 = arith.constant dense<0.000000e+00> : vector<16x256xf32>
    %39 = tpu.matmul %37, %38, %cst_14 {dimension_numbers = #tpu.dot_dimension_numbers<[1], [0], [0], [1], [0, 0, 1, 1], [], []>} : vector<16x128xbf16>, vector<128x256xbf16>, vector<16x256xf32> -> vector<16x256xf32>
    %40 = arith.addf %36, %39 : vector<16x256xf32>
    %c0_15 = arith.constant 0 : index
    %c0_16 = arith.constant 0 : index
    %41 = vector.load %arg5[%c0_15, %c0_16] : memref<1x256xf32, #tpu.memory_space<vmem>>, vector<1x256xf32>
    %42 = vector.broadcast %41 : vector<1x256xf32> to vector<16x256xf32>
    %43 = arith.addf %40, %42 : vector<16x256xf32>
    %44 = vector.extract_strided_slice %43 {offsets = [0, 0], sizes = [16, 128], strides = [1, 1]} : vector<16x256xf32> to vector<16x128xf32>
    %45 = vector.extract_strided_slice %43 {offsets = [0, 128], sizes = [16, 128], strides = [1, 1]} : vector<16x256xf32> to vector<16x128xf32>
    %46 = arith.negf %45 : vector<16x128xf32>
    %47 = math.exp %46 : vector<16x128xf32>
    %cst_17 = arith.constant 1.000000e+00 : f32
    %48 = vector.broadcast %cst_17 : f32 to vector<16x128xf32>
    %49 = arith.addf %48, %47 : vector<16x128xf32>
    %50 = arith.divf %48, %49 : vector<16x128xf32>
    %51 = arith.mulf %44, %50 : vector<16x128xf32>
    %cst_18 = arith.constant 1.000000e+00 : f32
    %52 = vector.broadcast %cst_18 : f32 to vector<16x128xf32>
    %53 = arith.subf %52, %50 : vector<16x128xf32>
    %54 = arith.mulf %9, %53 : vector<16x128xf32>
    %55 = arith.addf %51, %54 : vector<16x128xf32>
    %cst_19 = arith.constant dense<0.000000e+00> : vector<128xf32>
    %56 = vector.multi_reduction <add>, %55, %cst_19 [0] : vector<16x128xf32> to vector<128xf32>
    %57 = vector.shape_cast %56 : vector<128xf32> to vector<1x128xf32>
    %58 = arith.mulf %55, %55 : vector<16x128xf32>
    %cst_20 = arith.constant dense<0.000000e+00> : vector<128xf32>
    %59 = vector.multi_reduction <add>, %58, %cst_20 [0] : vector<16x128xf32> to vector<128xf32>
    %60 = vector.shape_cast %59 : vector<128xf32> to vector<1x128xf32>
    %cst_21 = arith.constant 0.000000e+00 : f32
    %61 = vector.broadcast %cst_21 : f32 to vector<6x128xf32>
    %62 = tpu.concatenate %57, %60, %61 in 0 : vector<1x128xf32>, vector<1x128xf32>, vector<6x128xf32> -> vector<8x128xf32>
    %c0_22 = arith.constant 0 : index
    %c0_23 = arith.constant 0 : index
    %63 = vector.load %arg7[%c0_22, %c0_23] : memref<8x128xf32, #tpu.memory_space<vmem>>, vector<8x128xf32>
    tpu.vector_store %arg7[%c0_22, %c0_23], %62 {strides = array<i32>} : memref<8x128xf32, #tpu.memory_space<vmem>>, vector<8x128xf32>,
    %64 = arith.truncf %55 : vector<16x128xf32> to vector<16x128xbf16>
    %c0_24 = arith.constant 0 : index
    %c0_25 = arith.constant 0 : index
    %65 = vector.load %arg6[%c0_24, %c0_25] : memref<16x128xbf16, #tpu.memory_space<vmem>>, vector<16x128xbf16>
    tpu.vector_store %arg6[%c0_24, %c0_25], %64 {strides = array<i32>} : memref<16x128xbf16, #tpu.memory_space<vmem>>, vector<16x128xbf16>,
    return
  }
  func.func @transform_0(%arg0: i32) -> (i32, i32) {
    %c0_i32 = arith.constant 0 : i32
    %c0_i32_0 = arith.constant 0 : i32
    return %arg0, %c0_i32 : i32, i32
  }
  func.func @transform_1(%arg0: i32) -> (i32, i32) {
    %c0_i32 = arith.constant 0 : i32
    %c0_i32_0 = arith.constant 0 : i32
    %c0_i32_1 = arith.constant 0 : i32
    return %c0_i32, %c0_i32_0 : i32, i32
  }
  func.func @transform_2(%arg0: i32) -> (i32, i32) {
    %c0_i32 = arith.constant 0 : i32
    %c0_i32_0 = arith.constant 0 : i32
    %c0_i32_1 = arith.constant 0 : i32
    return %c0_i32, %c0_i32_0 : i32, i32
  }
  func.func @transform_3(%arg0: i32) -> (i32, i32) {
    %c0_i32 = arith.constant 0 : i32
    %c0_i32_0 = arith.constant 0 : i32
    %c0_i32_1 = arith.constant 0 : i32
    return %c0_i32, %c0_i32_0 : i32, i32
  }
  func.func @transform_4(%arg0: i32) -> (i32, i32) {
    %c0_i32 = arith.constant 0 : i32
    %c0_i32_0 = arith.constant 0 : i32
    %c0_i32_1 = arith.constant 0 : i32
    return %c0_i32, %c0_i32_0 : i32, i32
  }
  func.func @transform_5(%arg0: i32) -> (i32, i32) {
    %c0_i32 = arith.constant 0 : i32
    %c0_i32_0 = arith.constant 0 : i32
    return %arg0, %c0_i32 : i32, i32
  }
  func.func @transform_6(%arg0: i32) -> (i32, i32) {
    %c0_i32 = arith.constant 0 : i32
    %c0_i32_0 = arith.constant 0 : i32
    return %arg0, %c0_i32 : i32, i32
  }
}

module attributes {stable_mosaic.version = 11 : i64} {
  func.func @kernel(%arg0: i32, %arg1: memref<16x128xbf16, #tpu.memory_space<vmem>>, %arg2: memref<1x128xf32, #tpu.memory_space<vmem>>, %arg3: memref<1x128xf32, #tpu.memory_space<vmem>>, %arg4: memref<16x8xf32, #tpu.memory_space<vmem>>) attributes {dimension_semantics = [#tpu.dimension_semantics<parallel>], iteration_bounds = array<i64: 4>, scalar_prefetch = 0 : i64, scratch_operands = 0 : i64, tpu.core_type = #tpu.core_type<tc>, window_params = [{transform_indices = @transform_0, window_bounds = array<i64: 16, 128>}, {pipeline_mode = #tpu.pipeline_mode<synchronous>, transform_indices = @transform_1, window_bounds = array<i64: 1, 128>}, {pipeline_mode = #tpu.pipeline_mode<synchronous>, transform_indices = @transform_2, window_bounds = array<i64: 1, 128>}, {transform_indices = @transform_3, window_bounds = array<i64: 16, 8>}]} {
    %c0 = arith.constant 0 : index
    %c0_0 = arith.constant 0 : index
    %0 = vector.load %arg1[%c0, %c0_0] : memref<16x128xbf16, #tpu.memory_space<vmem>>, vector<16x128xbf16>
    %1 = arith.extf %0 : vector<16x128xbf16> to vector<16x128xf32>
    %c0_1 = arith.constant 0 : index
    %c0_2 = arith.constant 0 : index
    %2 = vector.load %arg2[%c0_1, %c0_2] : memref<1x128xf32, #tpu.memory_space<vmem>>, vector<1x128xf32>
    %3 = vector.broadcast %2 : vector<1x128xf32> to vector<16x128xf32>
    %4 = arith.mulf %1, %3 : vector<16x128xf32>
    %c0_3 = arith.constant 0 : index
    %c0_4 = arith.constant 0 : index
    %5 = vector.load %arg3[%c0_3, %c0_4] : memref<1x128xf32, #tpu.memory_space<vmem>>, vector<1x128xf32>
    %6 = vector.broadcast %5 : vector<1x128xf32> to vector<16x128xf32>
    %7 = arith.addf %4, %6 : vector<16x128xf32>
    %cst = arith.constant 0.000000e+00 : f32
    %8 = vector.broadcast %cst : f32 to vector<16x128xf32>
    %9 = arith.maximumf %7, %8 : vector<16x128xf32>
    %10 = vector.extract_strided_slice %9 {offsets = [0, 0], sizes = [16, 8], strides = [1, 1]} : vector<16x128xf32> to vector<16x8xf32>
    %c0_5 = arith.constant 0 : index
    %c0_6 = arith.constant 0 : index
    %11 = vector.load %arg4[%c0_5, %c0_6] : memref<16x8xf32, #tpu.memory_space<vmem>>, vector<16x8xf32>
    tpu.vector_store %arg4[%c0_5, %c0_6], %10 {strides = array<i32>} : memref<16x8xf32, #tpu.memory_space<vmem>>, vector<16x8xf32>,
    return
  }
  func.func @transform_0(%arg0: i32) -> (i32, i32) {
    %c0_i32 = arith.constant 0 : i32
    %c0_i32_0 = arith.constant 0 : i32
    return %arg0, %c0_i32 : i32, i32
  }
  func.func @transform_1(%arg0: i32) -> (i32, i32) {
    %c0_i32 = arith.constant 0 : i32
    %c0_i32_0 = arith.constant 0 : i32
    %c0_i32_1 = arith.constant 0 : i32
    return %c0_i32, %c0_i32_0 : i32, i32
  }
  func.func @transform_2(%arg0: i32) -> (i32, i32) {
    %c0_i32 = arith.constant 0 : i32
    %c0_i32_0 = arith.constant 0 : i32
    %c0_i32_1 = arith.constant 0 : i32
    return %c0_i32, %c0_i32_0 : i32, i32
  }
  func.func @transform_3(%arg0: i32) -> (i32, i32) {
    %c0_i32 = arith.constant 0 : i32
    %c0_i32_0 = arith.constant 0 : i32
    return %arg0, %c0_i32 : i32, i32
  }
}

module attributes {stable_mosaic.version = 11 : i64} {
  func.func @kernel(%arg0: i32, %arg1: memref<16x128xbf16, #tpu.memory_space<vmem>>, %arg2: memref<1x128xf32, #tpu.memory_space<vmem>>, %arg3: memref<1x128xf32, #tpu.memory_space<vmem>>, %arg4: memref<128x384xbf16, #tpu.memory_space<vmem>>, %arg5: memref<1x384xf32, #tpu.memory_space<vmem>>, %arg6: memref<16x128xbf16, #tpu.memory_space<vmem>>, %arg7: memref<8x128xf32, #tpu.memory_space<vmem>>) attributes {dimension_semantics = [#tpu.dimension_semantics<parallel>], iteration_bounds = array<i64: 4>, scalar_prefetch = 0 : i64, scratch_operands = 0 : i64, tpu.core_type = #tpu.core_type<tc>, window_params = [{transform_indices = @transform_0, window_bounds = array<i64: 16, 128>}, {pipeline_mode = #tpu.pipeline_mode<synchronous>, transform_indices = @transform_1, window_bounds = array<i64: 1, 128>}, {pipeline_mode = #tpu.pipeline_mode<synchronous>, transform_indices = @transform_2, window_bounds = array<i64: 1, 128>}, {pipeline_mode = #tpu.pipeline_mode<synchronous>, transform_indices = @transform_3, window_bounds = array<i64: 128, 384>}, {pipeline_mode = #tpu.pipeline_mode<synchronous>, transform_indices = @transform_4, window_bounds = array<i64: 1, 384>}, {transform_indices = @transform_5, window_bounds = array<i64: 16, 128>}, {transform_indices = @transform_6, window_bounds = array<i64: 8, 128>}]} {
    %c0 = arith.constant 0 : index
    %c0_0 = arith.constant 0 : index
    %0 = vector.load %arg1[%c0, %c0_0] : memref<16x128xbf16, #tpu.memory_space<vmem>>, vector<16x128xbf16>
    %1 = arith.extf %0 : vector<16x128xbf16> to vector<16x128xf32>
    %c0_1 = arith.constant 0 : index
    %c0_2 = arith.constant 0 : index
    %2 = vector.load %arg2[%c0_1, %c0_2] : memref<1x128xf32, #tpu.memory_space<vmem>>, vector<1x128xf32>
    %3 = vector.broadcast %2 : vector<1x128xf32> to vector<16x128xf32>
    %4 = arith.mulf %1, %3 : vector<16x128xf32>
    %c0_3 = arith.constant 0 : index
    %c0_4 = arith.constant 0 : index
    %5 = vector.load %arg3[%c0_3, %c0_4] : memref<1x128xf32, #tpu.memory_space<vmem>>, vector<1x128xf32>
    %6 = vector.broadcast %5 : vector<1x128xf32> to vector<16x128xf32>
    %7 = arith.addf %4, %6 : vector<16x128xf32>
    %cst = arith.constant 0.000000e+00 : f32
    %8 = vector.broadcast %cst : f32 to vector<16x128xf32>
    %9 = arith.maximumf %7, %8 : vector<16x128xf32>
    %10 = arith.truncf %9 : vector<16x128xf32> to vector<16x128xbf16>
    %c0_5 = arith.constant 0 : index
    %c0_6 = arith.constant 0 : index
    %11 = vector.load %arg4[%c0_5, %c0_6] : memref<128x384xbf16, #tpu.memory_space<vmem>>, vector<128x384xbf16>
    %cst_7 = arith.constant dense<0.000000e+00> : vector<16x384xf32>
    %12 = tpu.matmul %10, %11, %cst_7 {dimension_numbers = #tpu.dot_dimension_numbers<[1], [0], [0], [1], [0, 0, 1, 1], [], []>} : vector<16x128xbf16>, vector<128x384xbf16>, vector<16x384xf32> -> vector<16x384xf32>
    %c0_8 = arith.constant 0 : index
    %c0_9 = arith.constant 0 : index
    %13 = vector.load %arg5[%c0_8, %c0_9] : memref<1x384xf32, #tpu.memory_space<vmem>>, vector<1x384xf32>
    %14 = vector.broadcast %13 : vector<1x384xf32> to vector<16x384xf32>
    %15 = arith.addf %12, %14 : vector<16x384xf32>
    %16 = vector.extract_strided_slice %15 {offsets = [0, 0], sizes = [16, 128], strides = [1, 1]} : vector<16x384xf32> to vector<16x128xf32>
    %17 = vector.extract_strided_slice %15 {offsets = [0, 128], sizes = [16, 128], strides = [1, 1]} : vector<16x384xf32> to vector<16x128xf32>
    %18 = arith.negf %17 : vector<16x128xf32>
    %19 = math.exp %18 : vector<16x128xf32>
    %cst_10 = arith.constant 1.000000e+00 : f32
    %20 = vector.broadcast %cst_10 : f32 to vector<16x128xf32>
    %21 = arith.addf %20, %19 : vector<16x128xf32>
    %22 = arith.divf %20, %21 : vector<16x128xf32>
    %23 = vector.extract_strided_slice %15 {offsets = [0, 256], sizes = [16, 128], strides = [1, 1]} : vector<16x384xf32> to vector<16x128xf32>
    %24 = arith.mulf %16, %22 : vector<16x128xf32>
    %cst_11 = arith.constant 1.000000e+00 : f32
    %25 = vector.broadcast %cst_11 : f32 to vector<16x128xf32>
    %26 = arith.subf %25, %22 : vector<16x128xf32>
    %27 = arith.mulf %23, %26 : vector<16x128xf32>
    %28 = arith.addf %24, %27 : vector<16x128xf32>
    %cst_12 = arith.constant dense<0.000000e+00> : vector<128xf32>
    %29 = vector.multi_reduction <add>, %28, %cst_12 [0] : vector<16x128xf32> to vector<128xf32>
    %30 = vector.shape_cast %29 : vector<128xf32> to vector<1x128xf32>
    %31 = arith.mulf %28, %28 : vector<16x128xf32>
    %cst_13 = arith.constant dense<0.000000e+00> : vector<128xf32>
    %32 = vector.multi_reduction <add>, %31, %cst_13 [0] : vector<16x128xf32> to vector<128xf32>
    %33 = vector.shape_cast %32 : vector<128xf32> to vector<1x128xf32>
    %cst_14 = arith.constant 0.000000e+00 : f32
    %34 = vector.broadcast %cst_14 : f32 to vector<6x128xf32>
    %35 = tpu.concatenate %30, %33, %34 in 0 : vector<1x128xf32>, vector<1x128xf32>, vector<6x128xf32> -> vector<8x128xf32>
    %c0_15 = arith.constant 0 : index
    %c0_16 = arith.constant 0 : index
    %36 = vector.load %arg7[%c0_15, %c0_16] : memref<8x128xf32, #tpu.memory_space<vmem>>, vector<8x128xf32>
    tpu.vector_store %arg7[%c0_15, %c0_16], %35 {strides = array<i32>} : memref<8x128xf32, #tpu.memory_space<vmem>>, vector<8x128xf32>,
    %37 = arith.truncf %28 : vector<16x128xf32> to vector<16x128xbf16>
    %c0_17 = arith.constant 0 : index
    %c0_18 = arith.constant 0 : index
    %38 = vector.load %arg6[%c0_17, %c0_18] : memref<16x128xbf16, #tpu.memory_space<vmem>>, vector<16x128xbf16>
    tpu.vector_store %arg6[%c0_17, %c0_18], %37 {strides = array<i32>} : memref<16x128xbf16, #tpu.memory_space<vmem>>, vector<16x128xbf16>,
    return
  }
  func.func @transform_0(%arg0: i32) -> (i32, i32) {
    %c0_i32 = arith.constant 0 : i32
    %c0_i32_0 = arith.constant 0 : i32
    return %arg0, %c0_i32 : i32, i32
  }
  func.func @transform_1(%arg0: i32) -> (i32, i32) {
    %c0_i32 = arith.constant 0 : i32
    %c0_i32_0 = arith.constant 0 : i32
    %c0_i32_1 = arith.constant 0 : i32
    return %c0_i32, %c0_i32_0 : i32, i32
  }
  func.func @transform_2(%arg0: i32) -> (i32, i32) {
    %c0_i32 = arith.constant 0 : i32
    %c0_i32_0 = arith.constant 0 : i32
    %c0_i32_1 = arith.constant 0 : i32
    return %c0_i32, %c0_i32_0 : i32, i32
  }
  func.func @transform_3(%arg0: i32) -> (i32, i32) {
    %c0_i32 = arith.constant 0 : i32
    %c0_i32_0 = arith.constant 0 : i32
    %c0_i32_1 = arith.constant 0 : i32
    return %c0_i32, %c0_i32_0 : i32, i32
  }
  func.func @transform_4(%arg0: i32) -> (i32, i32) {
    %c0_i32 = arith.constant 0 : i32
    %c0_i32_0 = arith.constant 0 : i32
    %c0_i32_1 = arith.constant 0 : i32
    return %c0_i32, %c0_i32_0 : i32, i32
  }
  func.func @transform_5(%arg0: i32) -> (i32, i32) {
    %c0_i32 = arith.constant 0 : i32
    %c0_i32_0 = arith.constant 0 : i32
    return %arg0, %c0_i32 : i32, i32
  }
  func.func @transform_6(%arg0: i32) -> (i32, i32) {
    %c0_i32 = arith.constant 0 : i32
    %c0_i32_0 = arith.constant 0 : i32
    return %arg0, %c0_i32 : i32, i32
  }
}

</mosaic_0001>

<llo_original>
// kernel: _lambda_.7
$region0: #{_lambda_.7}
  #allocation0 [shape = 'u32[]', space=smem, size = 0x4, offset = 0x4, fixed_abs, tag = 'smem constant byte address 0x4 - core index']
  #allocation1 [shape = 'u32[144,128]{1,0:T(1,128)}', space=vmem, size = 0x12000, scoped, tag = 'internal scratch']
  %s0 = inlined_call_operand.vmem [shape: bf16[64,128], index: 0, kind: input, shape index: {}]
  %s1 = inlined_call_operand.vmem [shape: f32[1,128], index: 1, kind: input, shape index: {}]
  %s2 = inlined_call_operand.vmem [shape: f32[1,128], index: 2, kind: input, shape index: {}]
  %s3 = inlined_call_operand.hbm [shape: f32[64,8], index: 3, kind: output, shape index: {}]
  %s4 = sld [smem:[#allocation0]]
  $region45: #{_lambda_.7} parent=0
    _
  %s6 = ssub.s32 1, %s4
  %s7 = scalar_select 0, %s6, %s4
  $region1: #{_lambda_.7} parent=0
    #allocation2 [shape = 'u8[16384]{0}', space=vmem, size = 0x4000, scoped, tag = 'output window, operand 0']
    #allocation3 [shape = 's32[2]{0}', space=sflag, size = 0x8, scoped, tag = 'scoped memory for _lambda_.7']
    %8 = vsyncpa [#allocation3], 0
    %s9 = scalar_lea.sflag [#allocation3], 1
    %10 = vsyncpa %s9, 0
    loop: start=0, step=1, limit=6
    $region2: #{_lambda_.7} parent=1 // loop_pre_header
      _
    $region3: #{_lambda_.7} parent=1 // loop_header
      %s12 = sphi 0, %s16
      %p13 = scmp.ge.s32.totalorder %s12, 6
      %s22 = sphi 0, %s24
      %s25 = sphi 0, %s22
      %s26 = sphi 0, %s25
      %s42 = sphi 0, %s26
      %s46 = sphi 0, %s46
      %s48 = sphi 0, %s46
      %s49 = sphi 0, %s48
      %s63 = sphi 0, %s49
      %s67 = sphi 0, %s67
      %s69 = sphi 0, %s67
      %s70 = sphi 0, %s69
      %s84 = sphi 0, %s70
      %s90 = sphi 0, %s92
      %s93 = sphi 0, %s90
      %s94 = sphi 0, %s93
      %s110 = sphi 0, %s94
    $region4: #{_lambda_.7} parent=1 // loop_header_branch
      %15 = sbr.rel (%p13) target = $region8
    $region5: #{_lambda_.7} parent=1 // loop_body
      %s17 = ssub.s32 %s12, 1
      %s18 = ssub.s32 %s12, 2
      %s19 = sadd.s32 %s12, 1
      %s20 = ssub.s32 %s12, %s19
      %p21 = scmp.eq.s32.totalorder %s20, 0
      %s23 = sadd.s32 %s22, 1
      %s24 = scalar_select %p21, %s22, %s23
      %p27 = pneg %p21
      %p28 = scmp.eq.s32.totalorder %s12, 3
      %p29 = por %p27, %p28
      %p30 = scmp.ne.s32.totalorder %s22, %s25
      %p31 = scmp.eq.s32.totalorder %s12, 0
      %p32 = por %p30, %p31
      %p33 = scmp.ne.s32.totalorder %s22, %s25
      %p34 = scmp.eq.s32.totalorder %s17, 3
      %p35 = por %p33, %p34
      %p36 = scmp.ne.s32.totalorder %s25, %s26
      %p37 = scmp.eq.s32.totalorder %s17, 0
      %p38 = por %p36, %p37
      %p39 = scmp.ne.s32.totalorder %s25, %s26
      %p40 = scmp.eq.s32.totalorder %s18, 3
      %p41 = por %p39, %p40
      %p43 = scmp.ne.s32.totalorder %s26, %s42
      %p44 = scmp.eq.s32.totalorder %s18, 0
      %p45 = por %p43, %p44
      %s47 = sadd.s32 %s46, 1
      %p50 = scmp.eq.s32.totalorder %s12, 3
      %p51 = scmp.ne.s32.totalorder %s46, %s48
      %p52 = scmp.eq.s32.totalorder %s12, 0
      %p53 = por %p51, %p52
      %p54 = scmp.ne.s32.totalorder %s46, %s48
      %p55 = scmp.eq.s32.totalorder %s17, 3
      %p56 = por %p54, %p55
      %p57 = scmp.ne.s32.totalorder %s48, %s49
      %p58 = scmp.eq.s32.totalorder %s17, 0
      %p59 = por %p57, %p58
      %p60 = scmp.ne.s32.totalorder %s48, %s49
      %p61 = scmp.eq.s32.totalorder %s18, 3
      %p62 = por %p60, %p61
      %p64 = scmp.ne.s32.totalorder %s49, %s63
      %p65 = scmp.eq.s32.totalorder %s18, 0
      %p66 = por %p64, %p65
      %s68 = sadd.s32 %s67, 1
      %p71 = scmp.eq.s32.totalorder %s12, 3
      %p72 = scmp.ne.s32.totalorder %s67, %s69
      %p73 = scmp.eq.s32.totalorder %s12, 0
      %p74 = por %p72, %p73
      %p75 = scmp.ne.s32.totalorder %s67, %s69
      %p76 = scmp.eq.s32.totalorder %s17, 3
      %p77 = por %p75, %p76
      %p78 = scmp.ne.s32.totalorder %s69, %s70
      %p79 = scmp.eq.s32.totalorder %s17, 0
      %p80 = por %p78, %p79
      %p81 = scmp.ne.s32.totalorder %s69, %s70
      %p82 = scmp.eq.s32.totalorder %s18, 3
      %p83 = por %p81, %p82
      %p85 = scmp.ne.s32.totalorder %s70, %s84
      %p86 = scmp.eq.s32.totalorder %s18, 0
      %p87 = por %p85, %p86
      %s88 = ssub.s32 %s12, %s19
      %p89 = scmp.eq.s32.totalorder %s88, 0
      %s91 = sadd.s32 %s90, 1
      %s92 = scalar_select %p89, %s90, %s91
      %p95 = pneg %p89
      %p96 = scmp.eq.s32.totalorder %s12, 3
      %p97 = por %p95, %p96
      %p98 = scmp.ne.s32.totalorder %s90, %s93
      %p99 = scmp.eq.s32.totalorder %s12, 0
      %p100 = por %p98, %p99
      %p101 = scmp.ne.s32.totalorder %s90, %s93
      %p102 = scmp.eq.s32.totalorder %s17, 3
      %p103 = por %p101, %p102
      %p104 = scmp.ne.s32.totalorder %s93, %s94
      %p105 = scmp.eq.s32.totalorder %s17, 0
      %p106 = por %p104, %p105
      %p107 = scmp.ne.s32.totalorder %s93, %s94
      %p108 = scmp.eq.s32.totalorder %s18, 3
      %p109 = por %p107, %p108
      %p111 = scmp.ne.s32.totalorder %s94, %s110
      %p112 = scmp.eq.s32.totalorder %s18, 0
      %p113 = por %p111, %p112
      %p114 = scmp.le.s32.totalorder 1, %s12
      %p115 = scmp.lt.s32.totalorder %s12, 5
      %p116 = pnand %p114, %p115
      %p117 = pneg %p116
      // Predicated region
      $region9: #{_lambda_.7} parent=5 // pred_check
        _
      $region10: #{_lambda_.7} parent=5 // pred_check_branch
        %119 = sbr.rel (%p116) target = $region12
      $region11: #{_lambda_.7} parent=5 // pred_region
        %s120 = ssub.s32 %s12, 1
        // Predicated region
        $region13: #{_lambda_.7} parent=11 // pred_check
          %p121 = pneg %p59
        $region14: #{_lambda_.7} parent=11 // pred_check_branch
          %123 = sbr.rel (%p121) target = $region16
        $region15: #{_lambda_.7} parent=11 // pred_region
          _
        $region16: #{_lambda_.7} parent=11 // pred_fallthru
          _
        // Predicated region
        $region17: #{_lambda_.7} parent=11 // pred_check
          %p124 = pneg %p80
        $region18: #{_lambda_.7} parent=11 // pred_check_branch
          %126 = sbr.rel (%p124) target = $region20
        $region19: #{_lambda_.7} parent=11 // pred_region
          _
        $region20: #{_lambda_.7} parent=11 // pred_fallthru
          _
      $region12: #{_lambda_.7} parent=5 // pred_fallthru
        _
      %p127 = scmp.lt.s32.totalorder %s12, 4
      // Predicated region
      $region21: #{_lambda_.7} parent=5 // pred_check
        %p128 = pneg %p127
      $region22: #{_lambda_.7} parent=5 // pred_check_branch
        %130 = sbr.rel (%p128) target = $region24
      $region23: #{_lambda_.7} parent=5 // pred_region
        // Predicated region
        $region25: #{_lambda_.7} parent=23 // pred_check
          %p131 = pneg %p32
        $region26: #{_lambda_.7} parent=23 // pred_check_branch
          %133 = sbr.rel (%p131) target = $region28
        $region27: #{_lambda_.7} parent=23 // pred_region
          %s134 = smul.u32 2, %s12
          %p135 = scmp.lt.s32.totalorder %s134, 7
          %s136 = scalar_select %p135, %s134, 7
          %s137 = smul.addr %s136, 4
          %s138 = scalar_lea.vmem %s0, %s137
          %s139 = smul.u32 2, %s12
        $region28: #{_lambda_.7} parent=23 // pred_fallthru
          _
      $region24: #{_lambda_.7} parent=5 // pred_fallthru
        _
      %p140 = scmp.le.s32.totalorder 1, %s12
      %p141 = scmp.lt.s32.totalorder %s12, 5
      %p142 = pnand %p140, %p141
      %p143 = pneg %p142
      // Predicated region
      $region29: #{_lambda_.7} parent=5 // pred_check
        _
      $region30: #{_lambda_.7} parent=5 // pred_check_branch
        %145 = sbr.rel (%p142) target = $region32
      $region31: #{_lambda_.7} parent=5 // pred_region
        %s146 = ssub.s32 %s12, 1
        %s147 = smul.u32 2, %s17
        %p148 = scmp.lt.s32.totalorder %s147, 7
        %s149 = scalar_select %p148, %s147, 7
        %s150 = smul.addr %s149, 4
        %s151 = scalar_lea.vmem %s0, %s150
        %p152 = pneg %p38
        %p153 = pneg %p35
        %p154 = pneg %p59
        %p155 = pneg %p56
        %p156 = pneg %p80
        %p157 = pneg %p77
        %p158 = pneg %p106
        %p159 = pneg %p103
        %s160 = sand.u32 %s93, 1
        %s161 = scalar_lea.sflag [#allocation3], %s160
        %s162 = sand.u32 %s93, 1
        %s163 = smul.addr %s162, 16
        %s164 = scalar_lea.vmem [#allocation2], %s163
        %s165 = smul.u32 2, %s17
        %p166 = scmp.lt.s32.totalorder %s165, 7
        %s167 = scalar_select %p166, %s165, 7
        %s168 = smul.addr %s167, 4
        %s169 = scalar_lea.vmem %s0, %s168
        %s170 = smul.u32 2, %s17
        %s171 = smul.u32 2, %s17
        %v172 = vld [vmem:[%s169] sm:$0xf]
        %v173 = vld [vmem:[%s169 + $0x4] sm:$0xf]
        %v174 = vunpack.c.l.bf16 %v172
        %v175 = vunpack.c.l.bf16 %v173
        %v176 = vld [vmem:[%s1] sm:$0x1]
        %v178 = vlaneseq
        %v179 = vshrl.u32 %v178, 7
        %v180 = vsub.s32 0, %v179
        %v181 = vrot.slane %v176, %v180
        %v183 = vmul.f32 %v174, %v181
        %v184 = vmul.f32 %v175, %v181
        %v185 = vld [vmem:[%s2] sm:$0x1]
        %v187 = vlaneseq
        %v188 = vshrl.u32 %v187, 7
        %v189 = vsub.s32 0, %v188
        %v190 = vrot.slane %v185, %v189
        %v192 = vadd.f32 %v183, %v190
        %v193 = vadd.f32 %v184, %v190
        %v194 = vmax.f32 %v192, 0.0
        %v195 = vmax.f32 %v193, 0.0
        %vm196 = vcmask 64512
        %197 = vst.msk [vmem:[%s164] sm:$0xff] %vm196, %v194
        %198 = vst.msk [vmem:[%s164 + $0x8] sm:$0xff] %vm196, %v195
        %s199 = sand.u32 %s93, 1
        %s200 = scalar_lea.sflag [#allocation3], %s199
        %s201 = sand.u32 %s93, 1
        %s202 = smul.addr %s201, 16
        %s203 = scalar_lea.vmem [#allocation2], %s202
        // Predicated region
        $region33: #{_lambda_.7} parent=31 // pred_check
          %p204 = pneg %p103
        $region34: #{_lambda_.7} parent=31 // pred_check_branch
          %206 = sbr.rel (%p204) target = $region36
        $region35: #{_lambda_.7} parent=31 // pred_region
          %s207 = smul.u32 2, %s17
          %s209 = ssub.s32 256, 256
          %210 = vsyncadd %s200, %s209
          %s211 = smul.addr %s207, 128
          %s212 = scalar_lea.hbm %s3, %s211
          %s213 = sshll.u32 %s203, 4
          %s214 = int_to_ptr.vmem [resolvable:$true] %s213
          %219 = dma.vmem_to_hbm [thread:$0]  %s214, 256, %s212, %s200, 128, 128, 8
        $region36: #{_lambda_.7} parent=31 // pred_fallthru
          _
      $region32: #{_lambda_.7} parent=5 // pred_fallthru
        _
      %p220 = scmp.le.s32.totalorder 2, %s12
      // Predicated region
      $region37: #{_lambda_.7} parent=5 // pred_check
        %p221 = pneg %p220
      $region38: #{_lambda_.7} parent=5 // pred_check_branch
        %223 = sbr.rel (%p221) target = $region40
      $region39: #{_lambda_.7} parent=5 // pred_region
        %s224 = ssub.s32 %s12, 2
        // Predicated region
        $region41: #{_lambda_.7} parent=39 // pred_check
          %p225 = pneg %p109
        $region42: #{_lambda_.7} parent=39 // pred_check_branch
          %227 = sbr.rel (%p225) target = $region44
        $region43: #{_lambda_.7} parent=39 // pred_region
          %s228 = sand.u32 %s94, 1
          %s229 = scalar_lea.sflag [#allocation3], %s228
          %s230 = sand.u32 %s94, 1
          %s231 = smul.addr %s230, 16
          %s232 = scalar_lea.vmem [#allocation2], %s231
          %233 = dma.done %s229, 256
        $region44: #{_lambda_.7} parent=39 // pred_fallthru
          _
      $region40: #{_lambda_.7} parent=5 // pred_fallthru
        _
    $region6: #{_lambda_.7} parent=1 // loop_footer
      %s16 = sadd.s32 1, %s12
    $region7: #{_lambda_.7} parent=1 // loop_footer_branch
      %11 = sbr.rel target = $region3
    $region8: #{_lambda_.7} parent=1 // loop_exit
      _
    %234 = vsyncpa [#allocation3], 1
    %s235 = scalar_lea.sflag [#allocation3], 1
    %236 = vsyncpa %s235, 1

// kernel: _lambda_.4
$region0: #{_lambda_.4}
  #allocation0 [shape = 'u32[]', space=smem, size = 0x4, offset = 0x4, fixed_abs, tag = 'smem constant byte address 0x4 - core index']
  #allocation1 [shape = 'u32[144,128]{1,0:T(1,128)}', space=vmem, size = 0x12000, scoped, tag = 'internal scratch']
  %s0 = inlined_call_operand.vmem [shape: f32[64,128], index: 0, kind: input, shape index: {}]
  %s1 = inlined_call_operand.vmem [shape: bf16[128,384], index: 1, kind: input, shape index: {}]
  %s2 = inlined_call_operand.vmem [shape: f32[1,384], index: 2, kind: input, shape index: {}]
  %s3 = inlined_call_operand.vmem [shape: bf16[64,128], index: 3, kind: output, shape index: {0}]
  %s4 = inlined_call_operand.vmem [shape: f32[32,128], index: 4, kind: output, shape index: {1}]
  %5 = xla_tuple %s3, %s4
  %s6 = sld [smem:[#allocation0]]
  $region53: #{_lambda_.4} parent=0
    _
  %s8 = ssub.s32 1, %s6
  %s9 = scalar_select 0, %s8, %s6
  loop: start=0, step=1, limit=6
  $region2: #{_lambda_.4} parent=0 // loop_pre_header
    _
  $region3: #{_lambda_.4} parent=0 // loop_header
    %s11 = sphi 0, %s15
    %p12 = scmp.ge.s32.totalorder %s11, 6
    %s21 = sphi 0, %s23
    %s24 = sphi 0, %s21
    %s25 = sphi 0, %s24
    %s41 = sphi 0, %s25
    %s45 = sphi 0, %s45
    %s47 = sphi 0, %s45
    %s48 = sphi 0, %s47
    %s62 = sphi 0, %s48
    %s66 = sphi 0, %s66
    %s68 = sphi 0, %s66
    %s69 = sphi 0, %s68
    %s83 = sphi 0, %s69
    %s89 = sphi 0, %s91
    %s92 = sphi 0, %s89
    %s93 = sphi 0, %s92
    %s109 = sphi 0, %s93
    %s115 = sphi 0, %s117
    %s118 = sphi 0, %s115
    %s119 = sphi 0, %s118
    %s135 = sphi 0, %s119
  $region4: #{_lambda_.4} parent=0 // loop_header_branch
    %14 = sbr.rel (%p12) target = $region8
  $region5: #{_lambda_.4} parent=0 // loop_body
    %s16 = ssub.s32 %s11, 1
    %s17 = ssub.s32 %s11, 2
    %s18 = sadd.s32 %s11, 1
    %s19 = ssub.s32 %s11, %s18
    %p20 = scmp.eq.s32.totalorder %s19, 0
    %s22 = sadd.s32 %s21, 1
    %s23 = scalar_select %p20, %s21, %s22
    %p26 = pneg %p20
    %p27 = scmp.eq.s32.totalorder %s11, 3
    %p28 = por %p26, %p27
    %p29 = scmp.ne.s32.totalorder %s21, %s24
    %p30 = scmp.eq.s32.totalorder %s11, 0
    %p31 = por %p29, %p30
    %p32 = scmp.ne.s32.totalorder %s21, %s24
    %p33 = scmp.eq.s32.totalorder %s16, 3
    %p34 = por %p32, %p33
    %p35 = scmp.ne.s32.totalorder %s24, %s25
    %p36 = scmp.eq.s32.totalorder %s16, 0
    %p37 = por %p35, %p36
    %p38 = scmp.ne.s32.totalorder %s24, %s25
    %p39 = scmp.eq.s32.totalorder %s17, 3
    %p40 = por %p38, %p39
    %p42 = scmp.ne.s32.totalorder %s25, %s41
    %p43 = scmp.eq.s32.totalorder %s17, 0
    %p44 = por %p42, %p43
    %s46 = sadd.s32 %s45, 1
    %p49 = scmp.eq.s32.totalorder %s11, 3
    %p50 = scmp.ne.s32.totalorder %s45, %s47
    %p51 = scmp.eq.s32.totalorder %s11, 0
    %p52 = por %p50, %p51
    %p53 = scmp.ne.s32.totalorder %s45, %s47
    %p54 = scmp.eq.s32.totalorder %s16, 3
    %p55 = por %p53, %p54
    %p56 = scmp.ne.s32.totalorder %s47, %s48
    %p57 = scmp.eq.s32.totalorder %s16, 0
    %p58 = por %p56, %p57
    %p59 = scmp.ne.s32.totalorder %s47, %s48
    %p60 = scmp.eq.s32.totalorder %s17, 3
    %p61 = por %p59, %p60
    %p63 = scmp.ne.s32.totalorder %s48, %s62
    %p64 = scmp.eq.s32.totalorder %s17, 0
    %p65 = por %p63, %p64
    %s67 = sadd.s32 %s66, 1
    %p70 = scmp.eq.s32.totalorder %s11, 3
    %p71 = scmp.ne.s32.totalorder %s66, %s68
    %p72 = scmp.eq.s32.totalorder %s11, 0
    %p73 = por %p71, %p72
    %p74 = scmp.ne.s32.totalorder %s66, %s68
    %p75 = scmp.eq.s32.totalorder %s16, 3
    %p76 = por %p74, %p75
    %p77 = scmp.ne.s32.totalorder %s68, %s69
    %p78 = scmp.eq.s32.totalorder %s16, 0
    %p79 = por %p77, %p78
    %p80 = scmp.ne.s32.totalorder %s68, %s69
    %p81 = scmp.eq.s32.totalorder %s17, 3
    %p82 = por %p80, %p81
    %p84 = scmp.ne.s32.totalorder %s69, %s83
    %p85 = scmp.eq.s32.totalorder %s17, 0
    %p86 = por %p84, %p85
    %s87 = ssub.s32 %s11, %s18
    %p88 = scmp.eq.s32.totalorder %s87, 0
    %s90 = sadd.s32 %s89, 1
    %s91 = scalar_select %p88, %s89, %s90
    %p94 = pneg %p88
    %p95 = scmp.eq.s32.totalorder %s11, 3
    %p96 = por %p94, %p95
    %p97 = scmp.ne.s32.totalorder %s89, %s92
    %p98 = scmp.eq.s32.totalorder %s11, 0
    %p99 = por %p97, %p98
    %p100 = scmp.ne.s32.totalorder %s89, %s92
    %p101 = scmp.eq.s32.totalorder %s16, 3
    %p102 = por %p100, %p101
    %p103 = scmp.ne.s32.totalorder %s92, %s93
    %p104 = scmp.eq.s32.totalorder %s16, 0
    %p105 = por %p103, %p104
    %p106 = scmp.ne.s32.totalorder %s92, %s93
    %p107 = scmp.eq.s32.totalorder %s17, 3
    %p108 = por %p106, %p107
    %p110 = scmp.ne.s32.totalorder %s93, %s109
    %p111 = scmp.eq.s32.totalorder %s17, 0
    %p112 = por %p110, %p111
    %s113 = ssub.s32 %s11, %s18
    %p114 = scmp.eq.s32.totalorder %s113, 0
    %s116 = sadd.s32 %s115, 1
    %s117 = scalar_select %p114, %s115, %s116
    %p120 = pneg %p114
    %p121 = scmp.eq.s32.totalorder %s11, 3
    %p122 = por %p120, %p121
    %p123 = scmp.ne.s32.totalorder %s115, %s118
    %p124 = scmp.eq.s32.totalorder %s11, 0
    %p125 = por %p123, %p124
    %p126 = scmp.ne.s32.totalorder %s115, %s118
    %p127 = scmp.eq.s32.totalorder %s16, 3
    %p128 = por %p126, %p127
    %p129 = scmp.ne.s32.totalorder %s118, %s119
    %p130 = scmp.eq.s32.totalorder %s16, 0
    %p131 = por %p129, %p130
    %p132 = scmp.ne.s32.totalorder %s118, %s119
    %p133 = scmp.eq.s32.totalorder %s17, 3
    %p134 = por %p132, %p133
    %p136 = scmp.ne.s32.totalorder %s119, %s135
    %p137 = scmp.eq.s32.totalorder %s17, 0
    %p138 = por %p136, %p137
    %p139 = scmp.le.s32.totalorder 1, %s11
    %p140 = scmp.lt.s32.totalorder %s11, 5
    %p141 = pnand %p139, %p140
    %p142 = pneg %p141
    // Predicated region
    $region9: #{_lambda_.4} parent=5 // pred_check
      _
    $region10: #{_lambda_.4} parent=5 // pred_check_branch
      %144 = sbr.rel (%p141) target = $region12
    $region11: #{_lambda_.4} parent=5 // pred_region
      %s145 = ssub.s32 %s11, 1
      // Predicated region
      $region13: #{_lambda_.4} parent=11 // pred_check
        %p146 = pneg %p58
      $region14: #{_lambda_.4} parent=11 // pred_check_branch
        %148 = sbr.rel (%p146) target = $region16
      $region15: #{_lambda_.4} parent=11 // pred_region
        _
      $region16: #{_lambda_.4} parent=11 // pred_fallthru
        _
      // Predicated region
      $region17: #{_lambda_.4} parent=11 // pred_check
        %p149 = pneg %p79
      $region18: #{_lambda_.4} parent=11 // pred_check_branch
        %151 = sbr.rel (%p149) target = $region20
      $region19: #{_lambda_.4} parent=11 // pred_region
        _
      $region20: #{_lambda_.4} parent=11 // pred_fallthru
        _
    $region12: #{_lambda_.4} parent=5 // pred_fallthru
      _
    %p152 = scmp.lt.s32.totalorder %s11, 4
    // Predicated region
    $region21: #{_lambda_.4} parent=5 // pred_check
      %p153 = pneg %p152
    $region22: #{_lambda_.4} parent=5 // pred_check_branch
      %155 = sbr.rel (%p153) target = $region24
    $region23: #{_lambda_.4} parent=5 // pred_region
      // Predicated region
      $region25: #{_lambda_.4} parent=23 // pred_check
        %p156 = pneg %p31
      $region26: #{_lambda_.4} parent=23 // pred_check_branch
        %158 = sbr.rel (%p156) target = $region28
      $region27: #{_lambda_.4} parent=23 // pred_region
        %s159 = smul.u32 2, %s11
        %p160 = scmp.lt.s32.totalorder %s159, 7
        %s161 = scalar_select %p160, %s159, 7
        %s162 = smul.addr %s161, 8
        %s163 = scalar_lea.vmem %s0, %s162
        %s164 = smul.u32 2, %s11
      $region28: #{_lambda_.4} parent=23 // pred_fallthru
        _
    $region24: #{_lambda_.4} parent=5 // pred_fallthru
      _
    %p165 = scmp.le.s32.totalorder 1, %s11
    %p166 = scmp.lt.s32.totalorder %s11, 5
    %p167 = pnand %p165, %p166
    %p168 = pneg %p167
    // Predicated region
    $region29: #{_lambda_.4} parent=5 // pred_check
      _
    $region30: #{_lambda_.4} parent=5 // pred_check_branch
      %170 = sbr.rel (%p167) target = $region32
    $region31: #{_lambda_.4} parent=5 // pred_region
      %s171 = ssub.s32 %s11, 1
      %s172 = smul.u32 2, %s16
      %p173 = scmp.lt.s32.totalorder %s172, 7
      %s174 = scalar_select %p173, %s172, 7
      %s175 = smul.addr %s174, 8
      %s176 = scalar_lea.vmem %s0, %s175
      %p177 = pneg %p37
      %p178 = pneg %p34
      %p179 = pneg %p58
      %p180 = pneg %p55
      %p181 = pneg %p79
      %p182 = pneg %p76
      %p183 = pneg %p105
      %p184 = pneg %p102
      %s185 = smul.u32 2, %s16
      %p186 = scmp.lt.s32.totalorder %s185, 7
      %s187 = scalar_select %p186, %s185, 7
      %s188 = smul.addr %s187, 4
      %s189 = scalar_lea.vmem %s3, %s188
      %p190 = pneg %p131
      %p191 = pneg %p128
      %p192 = scmp.lt.s32.totalorder %s16, 3
      %s193 = scalar_select %p192, %s16, 3
      %s194 = smul.addr %s193, 8
      %s195 = scalar_lea.vmem %s4, %s194
      %s196 = smul.u32 2, %s16
      %p197 = scmp.lt.s32.totalorder %s196, 7
      %s198 = scalar_select %p197, %s196, 7
      %s199 = smul.addr %s198, 8
      %s200 = scalar_lea.vmem %s0, %s199
      %s201 = smul.u32 2, %s16
      %s202 = smul.u32 2, %s16
      %p203 = scmp.lt.s32.totalorder %s202, 7
      %s204 = scalar_select %p203, %s202, 7
      %s205 = smul.addr %s204, 4
      %s206 = scalar_lea.vmem %s3, %s205
      %s207 = smul.u32 2, %s16
      %p208 = scmp.lt.s32.totalorder %s16, 3
      %s209 = scalar_select %p208, %s16, 3
      %s210 = smul.addr %s209, 8
      %s211 = scalar_lea.vmem %s4, %s210
      %v213 = vld [vmem:[%s200] sm:$0xff]
      %v214 = vld [vmem:[%s200 + $0x8] sm:$0xff]
      %v215 = vpack.c.bf16 %v214, %v213
      %v216 = vld [vmem:[%s1] sm:$0xff]
      %v217 = vld [vmem:[%s1 + $0x8] sm:$0xf]
      %v218 = vld [vmem:[%s1 + $0xc] sm:$0xff]
      %v219 = vld [vmem:[%s1 + $0x14] sm:$0xf]
      %v220 = vld [vmem:[%s1 + $0x18] sm:$0xff]
      %v221 = vld [vmem:[%s1 + $0x20] sm:$0xf]
      %v222 = vld [vmem:[%s1 + $0x24] sm:$0xff]
      %v223 = vld [vmem:[%s1 + $0x2c] sm:$0xf]
      %v224 = vld [vmem:[%s1 + $0x30] sm:$0xff]
      %v225 = vld [vmem:[%s1 + $0x38] sm:$0xf]
      %v226 = vld [vmem:[%s1 + $0x3c] sm:$0xff]
      %v227 = vld [vmem:[%s1 + $0x44] sm:$0xf]
      %v228 = vld [vmem:[%s1 + $0x48] sm:$0xff]
      %v229 = vld [vmem:[%s1 + $0x50] sm:$0xf]
      %v230 = vld [vmem:[%s1 + $0x54] sm:$0xff]
      %v231 = vld [vmem:[%s1 + $0x5c] sm:$0xf]
      %v232 = vld [vmem:[%s1 + $0x60] sm:$0xff]
      %v233 = vld [vmem:[%s1 + $0x68] sm:$0xf]
      %v234 = vld [vmem:[%s1 + $0x6c] sm:$0xff]
      %v235 = vld [vmem:[%s1 + $0x74] sm:$0xf]
      %v236 = vld [vmem:[%s1 + $0x78] sm:$0xff]
      %v237 = vld [vmem:[%s1 + $0x80] sm:$0xf]
      %v238 = vld [vmem:[%s1 + $0x84] sm:$0xff]
      %v239 = vld [vmem:[%s1 + $0x8c] sm:$0xf]
      %v240 = vld [vmem:[%s1 + $0x90] sm:$0xff]
      %v241 = vld [vmem:[%s1 + $0x98] sm:$0xf]
      %v242 = vld [vmem:[%s1 + $0x9c] sm:$0xff]
      %v243 = vld [vmem:[%s1 + $0xa4] sm:$0xf]
      %v244 = vld [vmem:[%s1 + $0xa8] sm:$0xff]
      %v245 = vld [vmem:[%s1 + $0xb0] sm:$0xf]
      %v246 = vld [vmem:[%s1 + $0xb4] sm:$0xff]
      %v247 = vld [vmem:[%s1 + $0xbc] sm:$0xf]
      %v248 = vld [vmem:[%s2] sm:$0x7]
      %v250 = vlaneseq
      %v251 = vshrl.u32 %v250, 7
      %v252 = vsub.s32 0, %v251
      %v253 = vrot.slane %v248, %v252
      %v254 = vlaneseq
      %v255 = vshrl.u32 %v254, 7
      %v256 = vsub.s32 1, %v255
      %v257 = vrot.slane %v248, %v256
      %v258 = vlaneseq
      %v259 = vshrl.u32 %v258, 7
      %v260 = vsub.s32 2, %v259
      %v261 = vrot.slane %v248, %v260
      %v297 = vunpack.c.l.b16 %v216
      %v298 = vunpack.c.h.b16 %v216
      %v299 = vunpack.c.l.b16 %v217
      %v300 = vunpack.c.l.b16 %v218
      %v301 = vunpack.c.h.b16 %v218
      %v302 = vunpack.c.l.b16 %v219
      %v303 = vunpack.c.l.b16 %v220
      %v304 = vunpack.c.h.b16 %v220
      %v305 = vunpack.c.l.b16 %v221
      %v306 = vunpack.c.l.b16 %v222
      %v307 = vunpack.c.h.b16 %v222
      %v308 = vunpack.c.l.b16 %v223
      %v309 = vunpack.c.l.b16 %v224
      %v310 = vunpack.c.h.b16 %v224
      %v311 = vunpack.c.l.b16 %v225
      %v312 = vunpack.c.l.b16 %v226
      %v313 = vunpack.c.h.b16 %v226
      %v314 = vunpack.c.l.b16 %v227
      %v315 = vunpack.c.l.b16 %v228
      %v316 = vunpack.c.h.b16 %v228
      %v317 = vunpack.c.l.b16 %v229
      %v318 = vunpack.c.l.b16 %v230
      %v319 = vunpack.c.h.b16 %v230
      %v320 = vunpack.c.l.b16 %v231
      %v321 = vunpack.c.l.b16 %v232
      %v322 = vunpack.c.h.b16 %v232
      %v323 = vunpack.c.l.b16 %v233
      %v324 = vunpack.c.l.b16 %v234
      %v325 = vunpack.c.h.b16 %v234
      %v326 = vunpack.c.l.b16 %v235
      %v327 = vunpack.c.l.b16 %v236
      %v328 = vunpack.c.h.b16 %v236
      %v329 = vunpack.c.l.b16 %v237
      %v330 = vunpack.c.l.b16 %v238
      %v331 = vunpack.c.h.b16 %v238
      %v332 = vunpack.c.l.b16 %v239
      %v333 = vunpack.c.l.b16 %v240
      %v334 = vunpack.c.h.b16 %v240
      %v335 = vunpack.c.l.b16 %v241
      %v336 = vunpack.c.l.b16 %v242
      %v337 = vunpack.c.h.b16 %v242
      %v338 = vunpack.c.l.b16 %v243
      %v339 = vunpack.c.l.b16 %v244
      %v340 = vunpack.c.h.b16 %v244
      %v341 = vunpack.c.l.b16 %v245
      %v342 = vunpack.c.l.b16 %v246
      %v343 = vunpack.c.h.b16 %v246
      %v344 = vunpack.c.l.b16 %v247
      %v345 = vpack.c.b16 %v300, %v297
      %v346 = vpack.c.b16 %v301, %v298
      %v347 = vpack.c.b16 %v302, %v299
      %v348 = vpack.c.b16 %v306, %v303
      %v349 = vpack.c.b16 %v307, %v304
      %v350 = vpack.c.b16 %v308, %v305
      %v351 = vpack.c.b16 %v312, %v309
      %v352 = vpack.c.b16 %v313, %v310
      %v353 = vpack.c.b16 %v314, %v311
      %v354 = vpack.c.b16 %v318, %v315
      %v355 = vpack.c.b16 %v319, %v316
      %v356 = vpack.c.b16 %v320, %v317
      %v357 = vpack.c.b16 %v324, %v321
      %v358 = vpack.c.b16 %v325, %v322
      %v359 = vpack.c.b16 %v326, %v323
      %v360 = vpack.c.b16 %v330, %v327
      %v361 = vpack.c.b16 %v331, %v328
      %v362 = vpack.c.b16 %v332, %v329
      %v363 = vpack.c.b16 %v336, %v333
      %v364 = vpack.c.b16 %v337, %v334
      %v365 = vpack.c.b16 %v338, %v335
      %v366 = vpack.c.b16 %v342, %v339
      %v367 = vpack.c.b16 %v343, %v340
      %v368 = vpack.c.b16 %v344, %v341
      %393 = vmatprep.subr.bf16.mxu0 %v367
      %394 = vmatpush1.bf16.msra.mxu0 %v366
      %395 = vmatprep.subr.bf16.mxu0 %v364
      %396 = vmatpush1.bf16.msra.mxu0 %v363
      %397 = vmatprep.subr.bf16.mxu0 %v361
      %398 = vmatpush1.bf16.msra.mxu0 %v360
      %399 = vmatprep.subr.bf16.mxu0 %v358
      %400 = vmatpush1.bf16.msra.mxu0 %v357
      %401 = vmatprep.subr.bf16.mxu0 %v355
      %402 = vmatpush1.bf16.msra.mxu0 %v354
      %403 = vmatprep.subr.bf16.mxu0 %v352
      %404 = vmatpush1.bf16.msra.mxu0 %v351
      %405 = vmatprep.subr.bf16.mxu0 %v349
      %406 = vmatpush1.bf16.msra.mxu0 %v348
      %407 = vmatprep.subr.bf16.mxu0 %v346
      %408 = vmatpush1.bf16.msra.mxu0 %v345
      %409 = vmatprep.subr.bf16.mxu0 0
      %410 = vmatpush2.bf16.msra.mxu0 0
      %411 = vmatprep.subr.bf16.mxu0 0
      %412 = vmatpush2.bf16.msra.mxu0 0
      %413 = vmatprep.subr.bf16.mxu0 0
      %414 = vmatpush2.bf16.msra.mxu0 0
      %415 = vmatprep.subr.bf16.mxu0 0
      %416 = vmatpush2.bf16.msra.mxu0 0
      %417 = vmatprep.subr.bf16.mxu0 0
      %418 = vmatpush2.bf16.msra.mxu0 0
      %419 = vmatprep.subr.bf16.mxu0 0
      %420 = vmatpush2.bf16.msra.mxu0 0
      %421 = vmatprep.subr.bf16.mxu0 0
      %422 = vmatpush2.bf16.msra.mxu0 0
      %423 = vmatprep.subr.bf16.mxu0 0
      %424 = vmatpush2.bf16.msra.mxu0 0
      %425 = vmatprep.mubr.bf16.mxu0 0
      %426 = vmatmul.mubr.bf16.gmra.mxu0 %v215
      %v427 = vpop.f32.mrf.mxu0
      %v428 = vadd.f32 %v253, %v427
      %v429 = vpop.f32.mrf.mxu0
      %v430 = vadd.f32 %v257, %v429
      %v431 = vpop.f32.mrf.mxu0
      %v432 = vadd.f32 %v253, %v431
      %v433 = vpop.f32.mrf.mxu0
      %v434 = vadd.f32 %v257, %v433
      %435 = vdwg.mxu0
      %436 = vmatprep.subr.bf16.mxu0 0
      %437 = vmatpush1.bf16.msra.mxu0 %v368
      %438 = vmatprep.subr.bf16.mxu0 0
      %439 = vmatpush1.bf16.msra.mxu0 %v365
      %440 = vmatprep.subr.bf16.mxu0 0
      %441 = vmatpush1.bf16.msra.mxu0 %v362
      %442 = vmatprep.subr.bf16.mxu0 0
      %443 = vmatpush1.bf16.msra.mxu0 %v359
      %444 = vmatprep.subr.bf16.mxu0 0
      %445 = vmatpush1.bf16.msra.mxu0 %v356
      %446 = vmatprep.subr.bf16.mxu0 0
      %447 = vmatpush1.bf16.msra.mxu0 %v353
      %448 = vmatprep.subr.bf16.mxu0 0
      %449 = vmatpush1.bf16.msra.mxu0 %v350
      %450 = vmatprep.subr.bf16.mxu0 0
      %451 = vmatpush1.bf16.msra.mxu0 %v347
      %452 = vmatprep.subr.bf16.mxu0 0
      %453 = vmatpush2.bf16.msra.mxu0 0
      %454 = vmatprep.subr.bf16.mxu0 0
      %455 = vmatpush2.bf16.msra.mxu0 0
      %456 = vmatprep.subr.bf16.mxu0 0
      %457 = vmatpush2.bf16.msra.mxu0 0
      %458 = vmatprep.subr.bf16.mxu0 0
      %459 = vmatpush2.bf16.msra.mxu0 0
      %460 = vmatprep.subr.bf16.mxu0 0
      %461 = vmatpush2.bf16.msra.mxu0 0
      %462 = vmatprep.subr.bf16.mxu0 0
      %463 = vmatpush2.bf16.msra.mxu0 0
      %464 = vmatprep.subr.bf16.mxu0 0
      %465 = vmatpush2.bf16.msra.mxu0 0
      %466 = vmatprep.subr.bf16.mxu0 0
      %467 = vmatpush2.bf16.msra.mxu0 0
      %468 = vmatprep.mubr.bf16.mxu0 0
      %469 = vmatmul.mubr.bf16.gmra.mxu0 %v215
      %v470 = vpop.f32.mrf.mxu0
      %v471 = vadd.f32 %v261, %v470
      %v472 = vpop.f32.mrf.mxu0
      %v473 = vpop.f32.mrf.mxu0
      %v474 = vadd.f32 %v261, %v473
      %v475 = vpop.f32.mrf.mxu0
      %476 = vdwg.mxu0
      %v477 = vxor.u32 %v430, 2147483648
      %v478 = vxor.u32 %v434, 2147483648
      %v479 = vmul.f32 %v477, 1.442695
      %v480 = vpow.pop %v479
      %v481 = vmul.f32 %v478, 1.442695
      %v482 = vpow.pop %v481
      %v483 = vadd.f32 %v480, 1.0
      %v484 = vadd.f32 %v482, 1.0
      %v485 = vrcp.pop %v483
      %v486 = vmul.f32 1.0, %v485
      %v487 = vrcp.pop %v484
      %v488 = vmul.f32 1.0, %v487
      %v489 = vmul.f32 %v428, %v486
      %v490 = vmul.f32 %v432, %v488
      %v491 = vsub.f32 1.0, %v486
      %v492 = vsub.f32 1.0, %v488
      %v493 = vmul.f32 %v471, %v491
      %v494 = vmul.f32 %v474, %v492
      %v495 = vadd.f32 %v489, %v493
      %v496 = vadd.f32 %v490, %v494
      %v497 = vadd.f32 %v495, %v496
      %v498 = vrot.slane %v497, 4
      %v499 = vadd.f32 %v497, %v498
      %v500 = vrot.slane %v499, 2
      %v501 = vadd.f32 %v499, %v500
      %v502 = vrot.slane %v501, 1
      %v503 = vadd.f32 %v501, %v502
      %v504 = vmul.f32 %v495, %v495
      %v505 = vmul.f32 %v496, %v496
      %v506 = vadd.f32 %v504, %v505
      %v507 = vrot.slane %v506, 4
      %v508 = vadd.f32 %v506, %v507
      %v509 = vrot.slane %v508, 2
      %v510 = vadd.f32 %v508, %v509
      %v511 = vrot.slane %v510, 1
      %v512 = vadd.f32 %v510, %v511
      %vm513 = vcmask 1040384
      %v514 = vsel %vm513, %v503, %v512
      %vm515 = vcmask 1041408
      %v516 = vsel %vm515, %v514, 0.0
      %517 = vst [vmem:[%s211] sm:$0xff] %v516
      %v518 = vpack.c.bf16 %v496, %v495
      %v520 = vunpack.c.l.b16 %v518
      %v521 = vunpack.c.h.b16 %v518
      %v522 = vpack.c.b16 %v520, %v520
      %v523 = vpack.c.b16 %v521, %v521
      %526 = vst [vmem:[%s206] sm:$0xf] %v522
      %527 = vst [vmem:[%s206 + $0x4] sm:$0xf] %v523
      %s528 = smul.u32 2, %s16
      %p529 = scmp.lt.s32.totalorder %s528, 7
      %s530 = scalar_select %p529, %s528, 7
      %s531 = smul.addr %s530, 4
      %s532 = scalar_lea.vmem %s3, %s531
      %p533 = scmp.lt.s32.totalorder %s16, 3
      %s534 = scalar_select %p533, %s16, 3
      %s535 = smul.addr %s534, 8
      %s536 = scalar_lea.vmem %s4, %s535
      // Predicated region
      $region33: #{_lambda_.4} parent=31 // pred_check
        %p537 = pneg %p102
      $region34: #{_lambda_.4} parent=31 // pred_check_branch
        %539 = sbr.rel (%p537) target = $region36
      $region35: #{_lambda_.4} parent=31 // pred_region
        %s540 = smul.u32 2, %s16
      $region36: #{_lambda_.4} parent=31 // pred_fallthru
        _
      // Predicated region
      $region37: #{_lambda_.4} parent=31 // pred_check
        %p541 = pneg %p128
      $region38: #{_lambda_.4} parent=31 // pred_check_branch
        %543 = sbr.rel (%p541) target = $region40
      $region39: #{_lambda_.4} parent=31 // pred_region
        _
      $region40: #{_lambda_.4} parent=31 // pred_fallthru
        _
    $region32: #{_lambda_.4} parent=5 // pred_fallthru
      _
    %p544 = scmp.le.s32.totalorder 2, %s11
    // Predicated region
    $region41: #{_lambda_.4} parent=5 // pred_check
      %p545 = pneg %p544
    $region42: #{_lambda_.4} parent=5 // pred_check_branch
      %547 = sbr.rel (%p545) target = $region44
    $region43: #{_lambda_.4} parent=5 // pred_region
      %s548 = ssub.s32 %s11, 2
      // Predicated region
      $region45: #{_lambda_.4} parent=43 // pred_check
        %p549 = pneg %p108
      $region46: #{_lambda_.4} parent=43 // pred_check_branch
        %551 = sbr.rel (%p549) target = $region48
      $region47: #{_lambda_.4} parent=43 // pred_region
        %s552 = smul.u32 2, %s17
        %p553 = scmp.lt.s32.totalorder %s552, 7
        %s554 = scalar_select %p553, %s552, 7
        %s555 = smul.addr %s554, 4
        %s556 = scalar_lea.vmem %s3, %s555
      $region48: #{_lambda_.4} parent=43 // pred_fallthru
        _
      // Predicated region
      $region49: #{_lambda_.4} parent=43 // pred_check
        %p557 = pneg %p134
      $region50: #{_lambda_.4} parent=43 // pred_check_branch
        %559 = sbr.rel (%p557) target = $region52
      $region51: #{_lambda_.4} parent=43 // pred_region
        %p560 = scmp.lt.s32.totalorder %s17, 3
        %s561 = scalar_select %p560, %s17, 3
        %s562 = smul.addr %s561, 8
        %s563 = scalar_lea.vmem %s4, %s562
      $region52: #{_lambda_.4} parent=43 // pred_fallthru
        _
    $region44: #{_lambda_.4} parent=5 // pred_fallthru
      _
  $region6: #{_lambda_.4} parent=0 // loop_footer
    %s15 = sadd.s32 1, %s11
  $region7: #{_lambda_.4} parent=0 // loop_footer_branch
    %10 = sbr.rel target = $region3
  $region8: #{_lambda_.4} parent=0 // loop_exit
    _

// kernel: _lambda_.5
$region0: #{_lambda_.5}
  #allocation0 [shape = 'u32[]', space=smem, size = 0x4, offset = 0x4, fixed_abs, tag = 'smem constant byte address 0x4 - core index']
  #allocation1 [shape = 'u32[144,128]{1,0:T(1,128)}', space=vmem, size = 0x12000, scoped, tag = 'internal scratch']
  %s0 = inlined_call_operand.vmem [shape: bf16[64,128], index: 0, kind: input, shape index: {}]
  %s1 = inlined_call_operand.vmem [shape: f32[1,128], index: 1, kind: input, shape index: {}]
  %s2 = inlined_call_operand.vmem [shape: f32[1,128], index: 2, kind: input, shape index: {}]
  %s3 = inlined_call_operand.vmem [shape: bf16[256,256], index: 3, kind: input, shape index: {}]
  %s4 = inlined_call_operand.vmem [shape: f32[1,256], index: 4, kind: input, shape index: {}]
  %s5 = inlined_call_operand.vmem [shape: bf16[64,128], index: 5, kind: output, shape index: {0}]
  %s6 = inlined_call_operand.vmem [shape: f32[32,128], index: 6, kind: output, shape index: {1}]
  %7 = xla_tuple %s5, %s6
  %s8 = sld [smem:[#allocation0]]
  $region61: #{_lambda_.5} parent=0
    _
  %s10 = ssub.s32 1, %s8
  %s11 = scalar_select 0, %s10, %s8
  loop: start=0, step=1, limit=6
  $region2: #{_lambda_.5} parent=0 // loop_pre_header
    _
  $region3: #{_lambda_.5} parent=0 // loop_header
    %s13 = sphi 0, %s17
    %p14 = scmp.ge.s32.totalorder %s13, 6
    %s23 = sphi 0, %s25
    %s26 = sphi 0, %s23
    %s27 = sphi 0, %s26
    %s43 = sphi 0, %s27
    %s47 = sphi 0, %s47
    %s49 = sphi 0, %s47
    %s50 = sphi 0, %s49
    %s64 = sphi 0, %s50
    %s68 = sphi 0, %s68
    %s70 = sphi 0, %s68
    %s71 = sphi 0, %s70
    %s85 = sphi 0, %s71
    %s89 = sphi 0, %s89
    %s91 = sphi 0, %s89
    %s92 = sphi 0, %s91
    %s106 = sphi 0, %s92
    %s110 = sphi 0, %s110
    %s112 = sphi 0, %s110
    %s113 = sphi 0, %s112
    %s127 = sphi 0, %s113
    %s133 = sphi 0, %s135
    %s136 = sphi 0, %s133
    %s137 = sphi 0, %s136
    %s153 = sphi 0, %s137
    %s159 = sphi 0, %s161
    %s162 = sphi 0, %s159
    %s163 = sphi 0, %s162
    %s179 = sphi 0, %s163
  $region4: #{_lambda_.5} parent=0 // loop_header_branch
    %16 = sbr.rel (%p14) target = $region8
  $region5: #{_lambda_.5} parent=0 // loop_body
    %s18 = ssub.s32 %s13, 1
    %s19 = ssub.s32 %s13, 2
    %s20 = sadd.s32 %s13, 1
    %s21 = ssub.s32 %s13, %s20
    %p22 = scmp.eq.s32.totalorder %s21, 0
    %s24 = sadd.s32 %s23, 1
    %s25 = scalar_select %p22, %s23, %s24
    %p28 = pneg %p22
    %p29 = scmp.eq.s32.totalorder %s13, 3
    %p30 = por %p28, %p29
    %p31 = scmp.ne.s32.totalorder %s23, %s26
    %p32 = scmp.eq.s32.totalorder %s13, 0
    %p33 = por %p31, %p32
    %p34 = scmp.ne.s32.totalorder %s23, %s26
    %p35 = scmp.eq.s32.totalorder %s18, 3
    %p36 = por %p34, %p35
    %p37 = scmp.ne.s32.totalorder %s26, %s27
    %p38 = scmp.eq.s32.totalorder %s18, 0
    %p39 = por %p37, %p38
    %p40 = scmp.ne.s32.totalorder %s26, %s27
    %p41 = scmp.eq.s32.totalorder %s19, 3
    %p42 = por %p40, %p41
    %p44 = scmp.ne.s32.totalorder %s27, %s43
    %p45 = scmp.eq.s32.totalorder %s19, 0
    %p46 = por %p44, %p45
    %s48 = sadd.s32 %s47, 1
    %p51 = scmp.eq.s32.totalorder %s13, 3
    %p52 = scmp.ne.s32.totalorder %s47, %s49
    %p53 = scmp.eq.s32.totalorder %s13, 0
    %p54 = por %p52, %p53
    %p55 = scmp.ne.s32.totalorder %s47, %s49
    %p56 = scmp.eq.s32.totalorder %s18, 3
    %p57 = por %p55, %p56
    %p58 = scmp.ne.s32.totalorder %s49, %s50
    %p59 = scmp.eq.s32.totalorder %s18, 0
    %p60 = por %p58, %p59
    %p61 = scmp.ne.s32.totalorder %s49, %s50
    %p62 = scmp.eq.s32.totalorder %s19, 3
    %p63 = por %p61, %p62
    %p65 = scmp.ne.s32.totalorder %s50, %s64
    %p66 = scmp.eq.s32.totalorder %s19, 0
    %p67 = por %p65, %p66
    %s69 = sadd.s32 %s68, 1
    %p72 = scmp.eq.s32.totalorder %s13, 3
    %p73 = scmp.ne.s32.totalorder %s68, %s70
    %p74 = scmp.eq.s32.totalorder %s13, 0
    %p75 = por %p73, %p74
    %p76 = scmp.ne.s32.totalorder %s68, %s70
    %p77 = scmp.eq.s32.totalorder %s18, 3
    %p78 = por %p76, %p77
    %p79 = scmp.ne.s32.totalorder %s70, %s71
    %p80 = scmp.eq.s32.totalorder %s18, 0
    %p81 = por %p79, %p80
    %p82 = scmp.ne.s32.totalorder %s70, %s71
    %p83 = scmp.eq.s32.totalorder %s19, 3
    %p84 = por %p82, %p83
    %p86 = scmp.ne.s32.totalorder %s71, %s85
    %p87 = scmp.eq.s32.totalorder %s19, 0
    %p88 = por %p86, %p87
    %s90 = sadd.s32 %s89, 1
    %p93 = scmp.eq.s32.totalorder %s13, 3
    %p94 = scmp.ne.s32.totalorder %s89, %s91
    %p95 = scmp.eq.s32.totalorder %s13, 0
    %p96 = por %p94, %p95
    %p97 = scmp.ne.s32.totalorder %s89, %s91
    %p98 = scmp.eq.s32.totalorder %s18, 3
    %p99 = por %p97, %p98
    %p100 = scmp.ne.s32.totalorder %s91, %s92
    %p101 = scmp.eq.s32.totalorder %s18, 0
    %p102 = por %p100, %p101
    %p103 = scmp.ne.s32.totalorder %s91, %s92
    %p104 = scmp.eq.s32.totalorder %s19, 3
    %p105 = por %p103, %p104
    %p107 = scmp.ne.s32.totalorder %s92, %s106
    %p108 = scmp.eq.s32.totalorder %s19, 0
    %p109 = por %p107, %p108
    %s111 = sadd.s32 %s110, 1
    %p114 = scmp.eq.s32.totalorder %s13, 3
    %p115 = scmp.ne.s32.totalorder %s110, %s112
    %p116 = scmp.eq.s32.totalorder %s13, 0
    %p117 = por %p115, %p116
    %p118 = scmp.ne.s32.totalorder %s110, %s112
    %p119 = scmp.eq.s32.totalorder %s18, 3
    %p120 = por %p118, %p119
    %p121 = scmp.ne.s32.totalorder %s112, %s113
    %p122 = scmp.eq.s32.totalorder %s18, 0
    %p123 = por %p121, %p122
    %p124 = scmp.ne.s32.totalorder %s112, %s113
    %p125 = scmp.eq.s32.totalorder %s19, 3
    %p126 = por %p124, %p125
    %p128 = scmp.ne.s32.totalorder %s113, %s127
    %p129 = scmp.eq.s32.totalorder %s19, 0
    %p130 = por %p128, %p129
    %s131 = ssub.s32 %s13, %s20
    %p132 = scmp.eq.s32.totalorder %s131, 0
    %s134 = sadd.s32 %s133, 1
    %s135 = scalar_select %p132, %s133, %s134
    %p138 = pneg %p132
    %p139 = scmp.eq.s32.totalorder %s13, 3
    %p140 = por %p138, %p139
    %p141 = scmp.ne.s32.totalorder %s133, %s136
    %p142 = scmp.eq.s32.totalorder %s13, 0
    %p143 = por %p141, %p142
    %p144 = scmp.ne.s32.totalorder %s133, %s136
    %p145 = scmp.eq.s32.totalorder %s18, 3
    %p146 = por %p144, %p145
    %p147 = scmp.ne.s32.totalorder %s136, %s137
    %p148 = scmp.eq.s32.totalorder %s18, 0
    %p149 = por %p147, %p148
    %p150 = scmp.ne.s32.totalorder %s136, %s137
    %p151 = scmp.eq.s32.totalorder %s19, 3
    %p152 = por %p150, %p151
    %p154 = scmp.ne.s32.totalorder %s137, %s153
    %p155 = scmp.eq.s32.totalorder %s19, 0
    %p156 = por %p154, %p155
    %s157 = ssub.s32 %s13, %s20
    %p158 = scmp.eq.s32.totalorder %s157, 0
    %s160 = sadd.s32 %s159, 1
    %s161 = scalar_select %p158, %s159, %s160
    %p164 = pneg %p158
    %p165 = scmp.eq.s32.totalorder %s13, 3
    %p166 = por %p164, %p165
    %p167 = scmp.ne.s32.totalorder %s159, %s162
    %p168 = scmp.eq.s32.totalorder %s13, 0
    %p169 = por %p167, %p168
    %p170 = scmp.ne.s32.totalorder %s159, %s162
    %p171 = scmp.eq.s32.totalorder %s18, 3
    %p172 = por %p170, %p171
    %p173 = scmp.ne.s32.totalorder %s162, %s163
    %p174 = scmp.eq.s32.totalorder %s18, 0
    %p175 = por %p173, %p174
    %p176 = scmp.ne.s32.totalorder %s162, %s163
    %p177 = scmp.eq.s32.totalorder %s19, 3
    %p178 = por %p176, %p177
    %p180 = scmp.ne.s32.totalorder %s163, %s179
    %p181 = scmp.eq.s32.totalorder %s19, 0
    %p182 = por %p180, %p181
    %p183 = scmp.le.s32.totalorder 1, %s13
    %p184 = scmp.lt.s32.totalorder %s13, 5
    %p185 = pnand %p183, %p184
    %p186 = pneg %p185
    // Predicated region
    $region9: #{_lambda_.5} parent=5 // pred_check
      _
    $region10: #{_lambda_.5} parent=5 // pred_check_branch
      %188 = sbr.rel (%p185) target = $region12
    $region11: #{_lambda_.5} parent=5 // pred_region
      %s189 = ssub.s32 %s13, 1
      // Predicated region
      $region13: #{_lambda_.5} parent=11 // pred_check
        %p190 = pneg %p60
      $region14: #{_lambda_.5} parent=11 // pred_check_branch
        %192 = sbr.rel (%p190) target = $region16
      $region15: #{_lambda_.5} parent=11 // pred_region
        _
      $region16: #{_lambda_.5} parent=11 // pred_fallthru
        _
      // Predicated region
      $region17: #{_lambda_.5} parent=11 // pred_check
        %p193 = pneg %p81
      $region18: #{_lambda_.5} parent=11 // pred_check_branch
        %195 = sbr.rel (%p193) target = $region20
      $region19: #{_lambda_.5} parent=11 // pred_region
        _
      $region20: #{_lambda_.5} parent=11 // pred_fallthru
        _
      // Predicated region
      $region21: #{_lambda_.5} parent=11 // pred_check
        %p196 = pneg %p102
      $region22: #{_lambda_.5} parent=11 // pred_check_branch
        %198 = sbr.rel (%p196) target = $region24
      $region23: #{_lambda_.5} parent=11 // pred_region
        _
      $region24: #{_lambda_.5} parent=11 // pred_fallthru
        _
      // Predicated region
      $region25: #{_lambda_.5} parent=11 // pred_check
        %p199 = pneg %p123
      $region26: #{_lambda_.5} parent=11 // pred_check_branch
        %201 = sbr.rel (%p199) target = $region28
      $region27: #{_lambda_.5} parent=11 // pred_region
        _
      $region28: #{_lambda_.5} parent=11 // pred_fallthru
        _
    $region12: #{_lambda_.5} parent=5 // pred_fallthru
      _
    %p202 = scmp.lt.s32.totalorder %s13, 4
    // Predicated region
    $region29: #{_lambda_.5} parent=5 // pred_check
      %p203 = pneg %p202
    $region30: #{_lambda_.5} parent=5 // pred_check_branch
      %205 = sbr.rel (%p203) target = $region32
    $region31: #{_lambda_.5} parent=5 // pred_region
      // Predicated region
      $region33: #{_lambda_.5} parent=31 // pred_check
        %p206 = pneg %p33
      $region34: #{_lambda_.5} parent=31 // pred_check_branch
        %208 = sbr.rel (%p206) target = $region36
      $region35: #{_lambda_.5} parent=31 // pred_region
        %s209 = smul.u32 2, %s13
        %p210 = scmp.lt.s32.totalorder %s209, 7
        %s211 = scalar_select %p210, %s209, 7
        %s212 = smul.addr %s211, 4
        %s213 = scalar_lea.vmem %s0, %s212
        %s214 = smul.u32 2, %s13
      $region36: #{_lambda_.5} parent=31 // pred_fallthru
        _
    $region32: #{_lambda_.5} parent=5 // pred_fallthru
      _
    %p215 = scmp.le.s32.totalorder 1, %s13
    %p216 = scmp.lt.s32.totalorder %s13, 5
    %p217 = pnand %p215, %p216
    %p218 = pneg %p217
    // Predicated region
    $region37: #{_lambda_.5} parent=5 // pred_check
      _
    $region38: #{_lambda_.5} parent=5 // pred_check_branch
      %220 = sbr.rel (%p217) target = $region40
    $region39: #{_lambda_.5} parent=5 // pred_region
      %s221 = ssub.s32 %s13, 1
      %s222 = smul.u32 2, %s18
      %p223 = scmp.lt.s32.totalorder %s222, 7
      %s224 = scalar_select %p223, %s222, 7
      %s225 = smul.addr %s224, 4
      %s226 = scalar_lea.vmem %s0, %s225
      %p227 = pneg %p39
      %p228 = pneg %p36
      %p229 = pneg %p60
      %p230 = pneg %p57
      %p231 = pneg %p81
      %p232 = pneg %p78
      %p233 = pneg %p102
      %p234 = pneg %p99
      %p235 = pneg %p123
      %p236 = pneg %p120
      %p237 = pneg %p149
      %p238 = pneg %p146
      %s239 = smul.u32 2, %s18
      %p240 = scmp.lt.s32.totalorder %s239, 7
      %s241 = scalar_select %p240, %s239, 7
      %s242 = smul.addr %s241, 4
      %s243 = scalar_lea.vmem %s5, %s242
      %p244 = pneg %p175
      %p245 = pneg %p172
      %p246 = scmp.lt.s32.totalorder %s18, 3
      %s247 = scalar_select %p246, %s18, 3
      %s248 = smul.addr %s247, 8
      %s249 = scalar_lea.vmem %s6, %s248
      %s250 = smul.u32 2, %s18
      %p251 = scmp.lt.s32.totalorder %s250, 7
      %s252 = scalar_select %p251, %s250, 7
      %s253 = smul.addr %s252, 4
      %s254 = scalar_lea.vmem %s0, %s253
      %s255 = smul.u32 2, %s18
      %s256 = smul.u32 2, %s18
      %p257 = scmp.lt.s32.totalorder %s256, 7
      %s258 = scalar_select %p257, %s256, 7
      %s259 = smul.addr %s258, 4
      %s260 = scalar_lea.vmem %s5, %s259
      %s261 = smul.u32 2, %s18
      %p262 = scmp.lt.s32.totalorder %s18, 3
      %s263 = scalar_select %p262, %s18, 3
      %s264 = smul.addr %s263, 8
      %s265 = scalar_lea.vmem %s6, %s264
      %v267 = vld [vmem:[%s254] sm:$0xf]
      %v268 = vld [vmem:[%s254 + $0x4] sm:$0xf]
      %v269 = vunpack.c.l.bf16 %v267
      %v270 = vunpack.c.l.bf16 %v268
      %v271 = vld [vmem:[%s1] sm:$0x1]
      %v273 = vlaneseq
      %v274 = vshrl.u32 %v273, 7
      %v275 = vsub.s32 0, %v274
      %v276 = vrot.slane %v271, %v275
      %v278 = vmul.f32 %v269, %v276
      %v279 = vmul.f32 %v270, %v276
      %v280 = vld [vmem:[%s2] sm:$0x1]
      %v282 = vlaneseq
      %v283 = vshrl.u32 %v282, 7
      %v284 = vsub.s32 0, %v283
      %v285 = vrot.slane %v280, %v284
      %v287 = vadd.f32 %v278, %v285
      %v288 = vadd.f32 %v279, %v285
      %v289 = vmax.f32 %v287, 0.0
      %v290 = vmax.f32 %v288, 0.0
      %v291 = vpack.c.bf16 %v290, %v289
      %v292 = vrot.slane %v289, 6
      %v293 = vrot.slane %v290, 6
      %v294 = vlaneseq
      %v295 = vshrl.u32 %v294, 7
      %vm296 = vcmp.lt.s32.totalorder %v295, 2
      %v297 = vsel %vm296, %v292, %v293
      %v298 = vsel %vm296, %v293, %v292
      %v299 = vadd.s32 %v295, 8
      %vm300 = vcmp.lt.s32.totalorder %v295, 0
      %v301 = vsub.s32 0, %v295
      %v302 = vsel %vm300, %v301, %v295
      %v303 = vshrl.u32 %v302, 3
      %v304 = vand.u32 %v302, 7
      %v305 = vsub.s32 0, %v304
      %v306 = vsel %vm300, %v305, %v304
      %vm307 = vcmp.lt.s32.totalorder %v299, 0
      %v308 = vsub.s32 0, %v299
      %v309 = vsel %vm307, %v308, %v299
      %v310 = vshrl.u32 %v309, 3
      %v311 = vand.u32 %v309, 7
      %v312 = vsub.s32 0, %v311
      %v313 = vsel %vm307, %v312, %v311
      %vm314 = vcmp.ne.s32.totalorder %v306, 0
      %vm315 = vcmp.ne.s32.totalorder %v313, 0
      %vm316 = vcmp.lt.s32.totalorder %v306, 0
      %vm317 = vcmp.lt.s32.totalorder %v313, 0
      %vm318 = vmand %vm316, %vm314
      %vm319 = vmand %vm317, %vm315
      %v320 = vadd.s32 %v306, 8
      %v321 = vadd.s32 %v313, 8
      %v322 = vsel %vm318, %v320, %v306
      %v323 = vsel %vm319, %v321, %v313
      %vm324 = vcmp.ge.s32.totalorder %v322, 2
      %vm325 = vcmp.ge.s32.totalorder %v323, 2
      %v326 = vsel %vm324, 1, 0
      %v327 = vsel %vm325, 1, 0
      %vm328 = vcmp.eq.s32.totalorder %v326, 1
      %vm329 = vcmp.eq.s32.totalorder %v327, 1
      %v330 = vsel %vm328, %v298, 0.0
      %v331 = vsel %vm329, %v297, 0.0
      %v332 = vld [vmem:[%s3] sm:$0xff]
      %v333 = vld [vmem:[%s3 + $0x8] sm:$0xff]
      %v334 = vld [vmem:[%s3 + $0x10] sm:$0xff]
      %v335 = vld [vmem:[%s3 + $0x18] sm:$0xff]
      %v336 = vld [vmem:[%s3 + $0x20] sm:$0xff]
      %v337 = vld [vmem:[%s3 + $0x28] sm:$0xff]
      %v338 = vld [vmem:[%s3 + $0x30] sm:$0xff]
      %v339 = vld [vmem:[%s3 + $0x38] sm:$0xff]
      %v340 = vld [vmem:[%s3 + $0x40] sm:$0xff]
      %v341 = vld [vmem:[%s3 + $0x48] sm:$0xff]
      %v342 = vld [vmem:[%s3 + $0x50] sm:$0xff]
      %v343 = vld [vmem:[%s3 + $0x58] sm:$0xff]
      %v344 = vld [vmem:[%s3 + $0x60] sm:$0xff]
      %v345 = vld [vmem:[%s3 + $0x68] sm:$0xff]
      %v346 = vld [vmem:[%s3 + $0x70] sm:$0xff]
      %v347 = vld [vmem:[%s3 + $0x78] sm:$0xff]
      %v348 = vpack.c.bf16 %v331, %v330
      %v349 = vld [vmem:[%s3 + $0x80] sm:$0xff]
      %v350 = vld [vmem:[%s3 + $0x88] sm:$0xff]
      %v351 = vld [vmem:[%s3 + $0x90] sm:$0xff]
      %v352 = vld [vmem:[%s3 + $0x98] sm:$0xff]
      %v353 = vld [vmem:[%s3 + $0xa0] sm:$0xff]
      %v354 = vld [vmem:[%s3 + $0xa8] sm:$0xff]
      %v355 = vld [vmem:[%s3 + $0xb0] sm:$0xff]
      %v356 = vld [vmem:[%s3 + $0xb8] sm:$0xff]
      %v357 = vld [vmem:[%s3 + $0xc0] sm:$0xff]
      %v358 = vld [vmem:[%s3 + $0xc8] sm:$0xff]
      %v359 = vld [vmem:[%s3 + $0xd0] sm:$0xff]
      %v360 = vld [vmem:[%s3 + $0xd8] sm:$0xff]
      %v361 = vld [vmem:[%s3 + $0xe0] sm:$0xff]
      %v362 = vld [vmem:[%s3 + $0xe8] sm:$0xff]
      %v363 = vld [vmem:[%s3 + $0xf0] sm:$0xff]
      %v364 = vld [vmem:[%s3 + $0xf8] sm:$0xff]
      %v381 = vunpack.c.l.b16 %v349
      %v382 = vunpack.c.h.b16 %v349
      %v383 = vunpack.c.l.b16 %v350
      %v384 = vunpack.c.h.b16 %v350
      %v385 = vunpack.c.l.b16 %v351
      %v386 = vunpack.c.h.b16 %v351
      %v387 = vunpack.c.l.b16 %v352
      %v388 = vunpack.c.h.b16 %v352
      %v389 = vunpack.c.l.b16 %v353
      %v390 = vunpack.c.h.b16 %v353
      %v391 = vunpack.c.l.b16 %v354
      %v392 = vunpack.c.h.b16 %v354
      %v393 = vunpack.c.l.b16 %v355
      %v394 = vunpack.c.h.b16 %v355
      %v395 = vunpack.c.l.b16 %v356
      %v396 = vunpack.c.h.b16 %v356
      %v397 = vunpack.c.l.b16 %v357
      %v398 = vunpack.c.h.b16 %v357
      %v399 = vunpack.c.l.b16 %v358
      %v400 = vunpack.c.h.b16 %v358
      %v401 = vunpack.c.l.b16 %v359
      %v402 = vunpack.c.h.b16 %v359
      %v403 = vunpack.c.l.b16 %v360
      %v404 = vunpack.c.h.b16 %v360
      %v405 = vunpack.c.l.b16 %v361
      %v406 = vunpack.c.h.b16 %v361
      %v407 = vunpack.c.l.b16 %v362
      %v408 = vunpack.c.h.b16 %v362
      %v409 = vunpack.c.l.b16 %v363
      %v410 = vunpack.c.h.b16 %v363
      %v411 = vunpack.c.l.b16 %v364
      %v412 = vunpack.c.h.b16 %v364
      %v413 = vpack.c.b16 %v383, %v381
      %v414 = vpack.c.b16 %v384, %v382
      %v415 = vpack.c.b16 %v387, %v385
      %v416 = vpack.c.b16 %v388, %v386
      %v417 = vpack.c.b16 %v391, %v389
      %v418 = vpack.c.b16 %v392, %v390
      %v419 = vpack.c.b16 %v395, %v393
      %v420 = vpack.c.b16 %v396, %v394
      %v421 = vpack.c.b16 %v399, %v397
      %v422 = vpack.c.b16 %v400, %v398
      %v423 = vpack.c.b16 %v403, %v401
      %v424 = vpack.c.b16 %v404, %v402
      %v425 = vpack.c.b16 %v407, %v405
      %v426 = vpack.c.b16 %v408, %v406
      %v427 = vpack.c.b16 %v411, %v409
      %v428 = vpack.c.b16 %v412, %v410
      %445 = vmatprep.subr.bf16.mxu0 %v428
      %446 = vmatpush1.bf16.msra.mxu0 %v427
      %447 = vmatprep.subr.bf16.mxu0 %v426
      %448 = vmatpush1.bf16.msra.mxu0 %v425
      %449 = vmatprep.subr.bf16.mxu0 %v424
      %450 = vmatpush1.bf16.msra.mxu0 %v423
      %451 = vmatprep.subr.bf16.mxu0 %v422
      %452 = vmatpush1.bf16.msra.mxu0 %v421
      %453 = vmatprep.subr.bf16.mxu0 %v420
      %454 = vmatpush1.bf16.msra.mxu0 %v419
      %455 = vmatprep.subr.bf16.mxu0 %v418
      %456 = vmatpush1.bf16.msra.mxu0 %v417
      %457 = vmatprep.subr.bf16.mxu0 %v416
      %458 = vmatpush1.bf16.msra.mxu0 %v415
      %459 = vmatprep.subr.bf16.mxu0 %v414
      %460 = vmatpush1.bf16.msra.mxu0 %v413
      %461 = vmatprep.subr.bf16.mxu0 0
      %462 = vmatpush2.bf16.msra.mxu0 0
      %463 = vmatprep.subr.bf16.mxu0 0
      %464 = vmatpush2.bf16.msra.mxu0 0
      %465 = vmatprep.subr.bf16.mxu0 0
      %466 = vmatpush2.bf16.msra.mxu0 0
      %467 = vmatprep.subr.bf16.mxu0 0
      %468 = vmatpush2.bf16.msra.mxu0 0
      %469 = vmatprep.subr.bf16.mxu0 0
      %470 = vmatpush2.bf16.msra.mxu0 0
      %471 = vmatprep.subr.bf16.mxu0 0
      %472 = vmatpush2.bf16.msra.mxu0 0
      %473 = vmatprep.subr.bf16.mxu0 0
      %474 = vmatpush2.bf16.msra.mxu0 0
      %475 = vmatprep.subr.bf16.mxu0 0
      %476 = vmatpush2.bf16.msra.mxu0 0
      %477 = vmatprep.mubr.bf16.mxu0 0
      %478 = vmatmul.mubr.bf16.gmra.mxu0 %v348
      %v479 = vpop.f32.mrf.mxu0
      %v480 = vadd.f32 0.0, %v479
      %v481 = vpop.f32.mrf.mxu0
      %v482 = vadd.f32 0.0, %v481
      %v483 = vpop.f32.mrf.mxu0
      %v484 = vadd.f32 0.0, %v483
      %v485 = vpop.f32.mrf.mxu0
      %v486 = vadd.f32 0.0, %v485
      %487 = vdwg.mxu0
      %v504 = vunpack.c.l.b16 %v332
      %v505 = vunpack.c.h.b16 %v332
      %v506 = vunpack.c.l.b16 %v333
      %v507 = vunpack.c.h.b16 %v333
      %v508 = vunpack.c.l.b16 %v334
      %v509 = vunpack.c.h.b16 %v334
      %v510 = vunpack.c.l.b16 %v335
      %v511 = vunpack.c.h.b16 %v335
      %v512 = vunpack.c.l.b16 %v336
      %v513 = vunpack.c.h.b16 %v336
      %v514 = vunpack.c.l.b16 %v337
      %v515 = vunpack.c.h.b16 %v337
      %v516 = vunpack.c.l.b16 %v338
      %v517 = vunpack.c.h.b16 %v338
      %v518 = vunpack.c.l.b16 %v339
      %v519 = vunpack.c.h.b16 %v339
      %v520 = vunpack.c.l.b16 %v340
      %v521 = vunpack.c.h.b16 %v340
      %v522 = vunpack.c.l.b16 %v341
      %v523 = vunpack.c.h.b16 %v341
      %v524 = vunpack.c.l.b16 %v342
      %v525 = vunpack.c.h.b16 %v342
      %v526 = vunpack.c.l.b16 %v343
      %v527 = vunpack.c.h.b16 %v343
      %v528 = vunpack.c.l.b16 %v344
      %v529 = vunpack.c.h.b16 %v344
      %v530 = vunpack.c.l.b16 %v345
      %v531 = vunpack.c.h.b16 %v345
      %v532 = vunpack.c.l.b16 %v346
      %v533 = vunpack.c.h.b16 %v346
      %v534 = vunpack.c.l.b16 %v347
      %v535 = vunpack.c.h.b16 %v347
      %v536 = vpack.c.b16 %v506, %v504
      %v537 = vpack.c.b16 %v507, %v505
      %v538 = vpack.c.b16 %v510, %v508
      %v539 = vpack.c.b16 %v511, %v509
      %v540 = vpack.c.b16 %v514, %v512
      %v541 = vpack.c.b16 %v515, %v513
      %v542 = vpack.c.b16 %v518, %v516
      %v543 = vpack.c.b16 %v519, %v517
      %v544 = vpack.c.b16 %v522, %v520
      %v545 = vpack.c.b16 %v523, %v521
      %v546 = vpack.c.b16 %v526, %v524
      %v547 = vpack.c.b16 %v527, %v525
      %v548 = vpack.c.b16 %v530, %v528
      %v549 = vpack.c.b16 %v531, %v529
      %v550 = vpack.c.b16 %v534, %v532
      %v551 = vpack.c.b16 %v535, %v533
      %568 = vmatprep.subr.bf16.mxu0 %v551
      %569 = vmatpush1.bf16.msra.mxu0 %v550
      %570 = vmatprep.subr.bf16.mxu0 %v549
      %571 = vmatpush1.bf16.msra.mxu0 %v548
      %572 = vmatprep.subr.bf16.mxu0 %v547
      %573 = vmatpush1.bf16.msra.mxu0 %v546
      %574 = vmatprep.subr.bf16.mxu0 %v545
      %575 = vmatpush1.bf16.msra.mxu0 %v544
      %576 = vmatprep.subr.bf16.mxu0 %v543
      %577 = vmatpush1.bf16.msra.mxu0 %v542
      %578 = vmatprep.subr.bf16.mxu0 %v541
      %579 = vmatpush1.bf16.msra.mxu0 %v540
      %580 = vmatprep.subr.bf16.mxu0 %v539
      %581 = vmatpush1.bf16.msra.mxu0 %v538
      %582 = vmatprep.subr.bf16.mxu0 %v537
      %583 = vmatpush1.bf16.msra.mxu0 %v536
      %584 = vmatprep.subr.bf16.mxu0 0
      %585 = vmatpush2.bf16.msra.mxu0 0
      %586 = vmatprep.subr.bf16.mxu0 0
      %587 = vmatpush2.bf16.msra.mxu0 0
      %588 = vmatprep.subr.bf16.mxu0 0
      %589 = vmatpush2.bf16.msra.mxu0 0
      %590 = vmatprep.subr.bf16.mxu0 0
      %591 = vmatpush2.bf16.msra.mxu0 0
      %592 = vmatprep.subr.bf16.mxu0 0
      %593 = vmatpush2.bf16.msra.mxu0 0
      %594 = vmatprep.subr.bf16.mxu0 0
      %595 = vmatpush2.bf16.msra.mxu0 0
      %596 = vmatprep.subr.bf16.mxu0 0
      %597 = vmatpush2.bf16.msra.mxu0 0
      %598 = vmatprep.subr.bf16.mxu0 0
      %599 = vmatpush2.bf16.msra.mxu0 0
      %600 = vmatprep.mubr.bf16.mxu0 0
      %601 = vmatmul.mubr.bf16.gmra.mxu0 %v291
      %v602 = vpop.f32.mrf.mxu0
      %v603 = vadd.f32 %v480, %v602
      %v604 = vpop.f32.mrf.mxu0
      %v605 = vadd.f32 %v482, %v604
      %v606 = vpop.f32.mrf.mxu0
      %v607 = vadd.f32 %v484, %v606
      %v608 = vpop.f32.mrf.mxu0
      %v609 = vadd.f32 %v486, %v608
      %610 = vdwg.mxu0
      %v611 = vld [vmem:[%s4] sm:$0x3]
      %v613 = vlaneseq
      %v614 = vshrl.u32 %v613, 7
      %v615 = vsub.s32 0, %v614
      %v616 = vrot.slane %v611, %v615
      %v617 = vlaneseq
      %v618 = vshrl.u32 %v617, 7
      %v619 = vsub.s32 1, %v618
      %v620 = vrot.slane %v611, %v619
      %v623 = vadd.f32 %v603, %v616
      %v624 = vadd.f32 %v605, %v620
      %v625 = vadd.f32 %v607, %v616
      %v626 = vadd.f32 %v609, %v620
      %v627 = vxor.u32 %v624, 2147483648
      %v628 = vxor.u32 %v626, 2147483648
      %v629 = vmul.f32 %v627, 1.442695
      %v630 = vpow.pop %v629
      %v631 = vmul.f32 %v628, 1.442695
      %v632 = vpow.pop %v631
      %v633 = vadd.f32 %v630, 1.0
      %v634 = vadd.f32 %v632, 1.0
      %v635 = vrcp.pop %v633
      %v636 = vmul.f32 1.0, %v635
      %v637 = vrcp.pop %v634
      %v638 = vmul.f32 1.0, %v637
      %v639 = vmul.f32 %v623, %v636
      %v640 = vmul.f32 %v625, %v638
      %v641 = vsub.f32 1.0, %v636
      %v642 = vsub.f32 1.0, %v638
      %v643 = vmul.f32 %v289, %v641
      %v644 = vmul.f32 %v290, %v642
      %v645 = vadd.f32 %v639, %v643
      %v646 = vadd.f32 %v640, %v644
      %v647 = vadd.f32 %v645, %v646
      %v648 = vrot.slane %v647, 4
      %v649 = vadd.f32 %v647, %v648
      %v650 = vrot.slane %v649, 2
      %v651 = vadd.f32 %v649, %v650
      %v652 = vrot.slane %v651, 1
      %v653 = vadd.f32 %v651, %v652
      %v654 = vmul.f32 %v645, %v645
      %v655 = vmul.f32 %v646, %v646
      %v656 = vadd.f32 %v654, %v655
      %v657 = vrot.slane %v656, 4
      %v658 = vadd.f32 %v656, %v657
      %v659 = vrot.slane %v658, 2
      %v660 = vadd.f32 %v658, %v659
      %v661 = vrot.slane %v660, 1
      %v662 = vadd.f32 %v660, %v661
      %vm663 = vcmask 1040384
      %v664 = vsel %vm663, %v653, %v662
      %vm665 = vcmask 1041408
      %v666 = vsel %vm665, %v664, 0.0
      %667 = vst [vmem:[%s265] sm:$0xff] %v666
      %v668 = vpack.c.bf16 %v646, %v645
      %v670 = vunpack.c.l.b16 %v668
      %v671 = vunpack.c.h.b16 %v668
      %v672 = vpack.c.b16 %v670, %v670
      %v673 = vpack.c.b16 %v671, %v671
      %676 = vst [vmem:[%s260] sm:$0xf] %v672
      %677 = vst [vmem:[%s260 + $0x4] sm:$0xf] %v673
      %s678 = smul.u32 2, %s18
      %p679 = scmp.lt.s32.totalorder %s678, 7
      %s680 = scalar_select %p679, %s678, 7
      %s681 = smul.addr %s680, 4
      %s682 = scalar_lea.vmem %s5, %s681
      %p683 = scmp.lt.s32.totalorder %s18, 3
      %s684 = scalar_select %p683, %s18, 3
      %s685 = smul.addr %s684, 8
      %s686 = scalar_lea.vmem %s6, %s685
      // Predicated region
      $region41: #{_lambda_.5} parent=39 // pred_check
        %p687 = pneg %p146
      $region42: #{_lambda_.5} parent=39 // pred_check_branch
        %689 = sbr.rel (%p687) target = $region44
      $region43: #{_lambda_.5} parent=39 // pred_region
        %s690 = smul.u32 2, %s18
      $region44: #{_lambda_.5} parent=39 // pred_fallthru
        _
      // Predicated region
      $region45: #{_lambda_.5} parent=39 // pred_check
        %p691 = pneg %p172
      $region46: #{_lambda_.5} parent=39 // pred_check_branch
        %693 = sbr.rel (%p691) target = $region48
      $region47: #{_lambda_.5} parent=39 // pred_region
        _
      $region48: #{_lambda_.5} parent=39 // pred_fallthru
        _
    $region40: #{_lambda_.5} parent=5 // pred_fallthru
      _
    %p694 = scmp.le.s32.totalorder 2, %s13
    // Predicated region
    $region49: #{_lambda_.5} parent=5 // pred_check
      %p695 = pneg %p694
    $region50: #{_lambda_.5} parent=5 // pred_check_branch
      %697 = sbr.rel (%p695) target = $region52
    $region51: #{_lambda_.5} parent=5 // pred_region
      %s698 = ssub.s32 %s13, 2
      // Predicated region
      $region53: #{_lambda_.5} parent=51 // pred_check
        %p699 = pneg %p152
      $region54: #{_lambda_.5} parent=51 // pred_check_branch
        %701 = sbr.rel (%p699) target = $region56
      $region55: #{_lambda_.5} parent=51 // pred_region
        %s702 = smul.u32 2, %s19
        %p703 = scmp.lt.s32.totalorder %s702, 7
        %s704 = scalar_select %p703, %s702, 7
        %s705 = smul.addr %s704, 4
        %s706 = scalar_lea.vmem %s5, %s705
      $region56: #{_lambda_.5} parent=51 // pred_fallthru
        _
      // Predicated region
      $region57: #{_lambda_.5} parent=51 // pred_check
        %p707 = pneg %p178
      $region58: #{_lambda_.5} parent=51 // pred_check_branch
        %709 = sbr.rel (%p707) target = $region60
      $region59: #{_lambda_.5} parent=51 // pred_region
        %p710 = scmp.lt.s32.totalorder %s19, 3
        %s711 = scalar_select %p710, %s19, 3
        %s712 = smul.addr %s711, 8
        %s713 = scalar_lea.vmem %s6, %s712
      $region60: #{_lambda_.5} parent=51 // pred_fallthru
        _
    $region52: #{_lambda_.5} parent=5 // pred_fallthru
      _
  $region6: #{_lambda_.5} parent=0 // loop_footer
    %s17 = sadd.s32 1, %s13
  $region7: #{_lambda_.5} parent=0 // loop_footer_branch
    %12 = sbr.rel target = $region3
  $region8: #{_lambda_.5} parent=0 // loop_exit
    _

// kernel: _lambda_.6
$region0: #{_lambda_.6}
  #allocation0 [shape = 'u32[]', space=smem, size = 0x4, offset = 0x4, fixed_abs, tag = 'smem constant byte address 0x4 - core index']
  #allocation1 [shape = 'u32[144,128]{1,0:T(1,128)}', space=vmem, size = 0x12000, scoped, tag = 'internal scratch']
  %s0 = inlined_call_operand.vmem [shape: bf16[64,128], index: 0, kind: input, shape index: {}]
  %s1 = inlined_call_operand.vmem [shape: f32[1,128], index: 1, kind: input, shape index: {}]
  %s2 = inlined_call_operand.vmem [shape: f32[1,128], index: 2, kind: input, shape index: {}]
  %s3 = inlined_call_operand.vmem [shape: bf16[128,384], index: 3, kind: input, shape index: {}]
  %s4 = inlined_call_operand.vmem [shape: f32[1,384], index: 4, kind: input, shape index: {}]
  %s5 = inlined_call_operand.vmem [shape: bf16[64,128], index: 5, kind: output, shape index: {0}]
  %s6 = inlined_call_operand.vmem [shape: f32[32,128], index: 6, kind: output, shape index: {1}]
  %7 = xla_tuple %s5, %s6
  %s8 = sld [smem:[#allocation0]]
  $region61: #{_lambda_.6} parent=0
    _
  %s10 = ssub.s32 1, %s8
  %s11 = scalar_select 0, %s10, %s8
  loop: start=0, step=1, limit=6
  $region2: #{_lambda_.6} parent=0 // loop_pre_header
    _
  $region3: #{_lambda_.6} parent=0 // loop_header
    %s13 = sphi 0, %s17
    %p14 = scmp.ge.s32.totalorder %s13, 6
    %s23 = sphi 0, %s25
    %s26 = sphi 0, %s23
    %s27 = sphi 0, %s26
    %s43 = sphi 0, %s27
    %s47 = sphi 0, %s47
    %s49 = sphi 0, %s47
    %s50 = sphi 0, %s49
    %s64 = sphi 0, %s50
    %s68 = sphi 0, %s68
    %s70 = sphi 0, %s68
    %s71 = sphi 0, %s70
    %s85 = sphi 0, %s71
    %s89 = sphi 0, %s89
    %s91 = sphi 0, %s89
    %s92 = sphi 0, %s91
    %s106 = sphi 0, %s92
    %s110 = sphi 0, %s110
    %s112 = sphi 0, %s110
    %s113 = sphi 0, %s112
    %s127 = sphi 0, %s113
    %s133 = sphi 0, %s135
    %s136 = sphi 0, %s133
    %s137 = sphi 0, %s136
    %s153 = sphi 0, %s137
    %s159 = sphi 0, %s161
    %s162 = sphi 0, %s159
    %s163 = sphi 0, %s162
    %s179 = sphi 0, %s163
  $region4: #{_lambda_.6} parent=0 // loop_header_branch
    %16 = sbr.rel (%p14) target = $region8
  $region5: #{_lambda_.6} parent=0 // loop_body
    %s18 = ssub.s32 %s13, 1
    %s19 = ssub.s32 %s13, 2
    %s20 = sadd.s32 %s13, 1
    %s21 = ssub.s32 %s13, %s20
    %p22 = scmp.eq.s32.totalorder %s21, 0
    %s24 = sadd.s32 %s23, 1
    %s25 = scalar_select %p22, %s23, %s24
    %p28 = pneg %p22
    %p29 = scmp.eq.s32.totalorder %s13, 3
    %p30 = por %p28, %p29
    %p31 = scmp.ne.s32.totalorder %s23, %s26
    %p32 = scmp.eq.s32.totalorder %s13, 0
    %p33 = por %p31, %p32
    %p34 = scmp.ne.s32.totalorder %s23, %s26
    %p35 = scmp.eq.s32.totalorder %s18, 3
    %p36 = por %p34, %p35
    %p37 = scmp.ne.s32.totalorder %s26, %s27
    %p38 = scmp.eq.s32.totalorder %s18, 0
    %p39 = por %p37, %p38
    %p40 = scmp.ne.s32.totalorder %s26, %s27
    %p41 = scmp.eq.s32.totalorder %s19, 3
    %p42 = por %p40, %p41
    %p44 = scmp.ne.s32.totalorder %s27, %s43
    %p45 = scmp.eq.s32.totalorder %s19, 0
    %p46 = por %p44, %p45
    %s48 = sadd.s32 %s47, 1
    %p51 = scmp.eq.s32.totalorder %s13, 3
    %p52 = scmp.ne.s32.totalorder %s47, %s49
    %p53 = scmp.eq.s32.totalorder %s13, 0
    %p54 = por %p52, %p53
    %p55 = scmp.ne.s32.totalorder %s47, %s49
    %p56 = scmp.eq.s32.totalorder %s18, 3
    %p57 = por %p55, %p56
    %p58 = scmp.ne.s32.totalorder %s49, %s50
    %p59 = scmp.eq.s32.totalorder %s18, 0
    %p60 = por %p58, %p59
    %p61 = scmp.ne.s32.totalorder %s49, %s50
    %p62 = scmp.eq.s32.totalorder %s19, 3
    %p63 = por %p61, %p62
    %p65 = scmp.ne.s32.totalorder %s50, %s64
    %p66 = scmp.eq.s32.totalorder %s19, 0
    %p67 = por %p65, %p66
    %s69 = sadd.s32 %s68, 1
    %p72 = scmp.eq.s32.totalorder %s13, 3
    %p73 = scmp.ne.s32.totalorder %s68, %s70
    %p74 = scmp.eq.s32.totalorder %s13, 0
    %p75 = por %p73, %p74
    %p76 = scmp.ne.s32.totalorder %s68, %s70
    %p77 = scmp.eq.s32.totalorder %s18, 3
    %p78 = por %p76, %p77
    %p79 = scmp.ne.s32.totalorder %s70, %s71
    %p80 = scmp.eq.s32.totalorder %s18, 0
    %p81 = por %p79, %p80
    %p82 = scmp.ne.s32.totalorder %s70, %s71
    %p83 = scmp.eq.s32.totalorder %s19, 3
    %p84 = por %p82, %p83
    %p86 = scmp.ne.s32.totalorder %s71, %s85
    %p87 = scmp.eq.s32.totalorder %s19, 0
    %p88 = por %p86, %p87
    %s90 = sadd.s32 %s89, 1
    %p93 = scmp.eq.s32.totalorder %s13, 3
    %p94 = scmp.ne.s32.totalorder %s89, %s91
    %p95 = scmp.eq.s32.totalorder %s13, 0
    %p96 = por %p94, %p95
    %p97 = scmp.ne.s32.totalorder %s89, %s91
    %p98 = scmp.eq.s32.totalorder %s18, 3
    %p99 = por %p97, %p98
    %p100 = scmp.ne.s32.totalorder %s91, %s92
    %p101 = scmp.eq.s32.totalorder %s18, 0
    %p102 = por %p100, %p101
    %p103 = scmp.ne.s32.totalorder %s91, %s92
    %p104 = scmp.eq.s32.totalorder %s19, 3
    %p105 = por %p103, %p104
    %p107 = scmp.ne.s32.totalorder %s92, %s106
    %p108 = scmp.eq.s32.totalorder %s19, 0
    %p109 = por %p107, %p108
    %s111 = sadd.s32 %s110, 1
    %p114 = scmp.eq.s32.totalorder %s13, 3
    %p115 = scmp.ne.s32.totalorder %s110, %s112
    %p116 = scmp.eq.s32.totalorder %s13, 0
    %p117 = por %p115, %p116
    %p118 = scmp.ne.s32.totalorder %s110, %s112
    %p119 = scmp.eq.s32.totalorder %s18, 3
    %p120 = por %p118, %p119
    %p121 = scmp.ne.s32.totalorder %s112, %s113
    %p122 = scmp.eq.s32.totalorder %s18, 0
    %p123 = por %p121, %p122
    %p124 = scmp.ne.s32.totalorder %s112, %s113
    %p125 = scmp.eq.s32.totalorder %s19, 3
    %p126 = por %p124, %p125
    %p128 = scmp.ne.s32.totalorder %s113, %s127
    %p129 = scmp.eq.s32.totalorder %s19, 0
    %p130 = por %p128, %p129
    %s131 = ssub.s32 %s13, %s20
    %p132 = scmp.eq.s32.totalorder %s131, 0
    %s134 = sadd.s32 %s133, 1
    %s135 = scalar_select %p132, %s133, %s134
    %p138 = pneg %p132
    %p139 = scmp.eq.s32.totalorder %s13, 3
    %p140 = por %p138, %p139
    %p141 = scmp.ne.s32.totalorder %s133, %s136
    %p142 = scmp.eq.s32.totalorder %s13, 0
    %p143 = por %p141, %p142
    %p144 = scmp.ne.s32.totalorder %s133, %s136
    %p145 = scmp.eq.s32.totalorder %s18, 3
    %p146 = por %p144, %p145
    %p147 = scmp.ne.s32.totalorder %s136, %s137
    %p148 = scmp.eq.s32.totalorder %s18, 0
    %p149 = por %p147, %p148
    %p150 = scmp.ne.s32.totalorder %s136, %s137
    %p151 = scmp.eq.s32.totalorder %s19, 3
    %p152 = por %p150, %p151
    %p154 = scmp.ne.s32.totalorder %s137, %s153
    %p155 = scmp.eq.s32.totalorder %s19, 0
    %p156 = por %p154, %p155
    %s157 = ssub.s32 %s13, %s20
    %p158 = scmp.eq.s32.totalorder %s157, 0
    %s160 = sadd.s32 %s159, 1
    %s161 = scalar_select %p158, %s159, %s160
    %p164 = pneg %p158
    %p165 = scmp.eq.s32.totalorder %s13, 3
    %p166 = por %p164, %p165
    %p167 = scmp.ne.s32.totalorder %s159, %s162
    %p168 = scmp.eq.s32.totalorder %s13, 0
    %p169 = por %p167, %p168
    %p170 = scmp.ne.s32.totalorder %s159, %s162
    %p171 = scmp.eq.s32.totalorder %s18, 3
    %p172 = por %p170, %p171
    %p173 = scmp.ne.s32.totalorder %s162, %s163
    %p174 = scmp.eq.s32.totalorder %s18, 0
    %p175 = por %p173, %p174
    %p176 = scmp.ne.s32.totalorder %s162, %s163
    %p177 = scmp.eq.s32.totalorder %s19, 3
    %p178 = por %p176, %p177
    %p180 = scmp.ne.s32.totalorder %s163, %s179
    %p181 = scmp.eq.s32.totalorder %s19, 0
    %p182 = por %p180, %p181
    %p183 = scmp.le.s32.totalorder 1, %s13
    %p184 = scmp.lt.s32.totalorder %s13, 5
    %p185 = pnand %p183, %p184
    %p186 = pneg %p185
    // Predicated region
    $region9: #{_lambda_.6} parent=5 // pred_check
      _
    $region10: #{_lambda_.6} parent=5 // pred_check_branch
      %188 = sbr.rel (%p185) target = $region12
    $region11: #{_lambda_.6} parent=5 // pred_region
      %s189 = ssub.s32 %s13, 1
      // Predicated region
      $region13: #{_lambda_.6} parent=11 // pred_check
        %p190 = pneg %p60
      $region14: #{_lambda_.6} parent=11 // pred_check_branch
        %192 = sbr.rel (%p190) target = $region16
      $region15: #{_lambda_.6} parent=11 // pred_region
        _
      $region16: #{_lambda_.6} parent=11 // pred_fallthru
        _
      // Predicated region
      $region17: #{_lambda_.6} parent=11 // pred_check
        %p193 = pneg %p81
      $region18: #{_lambda_.6} parent=11 // pred_check_branch
        %195 = sbr.rel (%p193) target = $region20
      $region19: #{_lambda_.6} parent=11 // pred_region
        _
      $region20: #{_lambda_.6} parent=11 // pred_fallthru
        _
      // Predicated region
      $region21: #{_lambda_.6} parent=11 // pred_check
        %p196 = pneg %p102
      $region22: #{_lambda_.6} parent=11 // pred_check_branch
        %198 = sbr.rel (%p196) target = $region24
      $region23: #{_lambda_.6} parent=11 // pred_region
        _
      $region24: #{_lambda_.6} parent=11 // pred_fallthru
        _
      // Predicated region
      $region25: #{_lambda_.6} parent=11 // pred_check
        %p199 = pneg %p123
      $region26: #{_lambda_.6} parent=11 // pred_check_branch
        %201 = sbr.rel (%p199) target = $region28
      $region27: #{_lambda_.6} parent=11 // pred_region
        _
      $region28: #{_lambda_.6} parent=11 // pred_fallthru
        _
    $region12: #{_lambda_.6} parent=5 // pred_fallthru
      _
    %p202 = scmp.lt.s32.totalorder %s13, 4
    // Predicated region
    $region29: #{_lambda_.6} parent=5 // pred_check
      %p203 = pneg %p202
    $region30: #{_lambda_.6} parent=5 // pred_check_branch
      %205 = sbr.rel (%p203) target = $region32
    $region31: #{_lambda_.6} parent=5 // pred_region
      // Predicated region
      $region33: #{_lambda_.6} parent=31 // pred_check
        %p206 = pneg %p33
      $region34: #{_lambda_.6} parent=31 // pred_check_branch
        %208 = sbr.rel (%p206) target = $region36
      $region35: #{_lambda_.6} parent=31 // pred_region
        %s209 = smul.u32 2, %s13
        %p210 = scmp.lt.s32.totalorder %s209, 7
        %s211 = scalar_select %p210, %s209, 7
        %s212 = smul.addr %s211, 4
        %s213 = scalar_lea.vmem %s0, %s212
        %s214 = smul.u32 2, %s13
      $region36: #{_lambda_.6} parent=31 // pred_fallthru
        _
    $region32: #{_lambda_.6} parent=5 // pred_fallthru
      _
    %p215 = scmp.le.s32.totalorder 1, %s13
    %p216 = scmp.lt.s32.totalorder %s13, 5
    %p217 = pnand %p215, %p216
    %p218 = pneg %p217
    // Predicated region
    $region37: #{_lambda_.6} parent=5 // pred_check
      _
    $region38: #{_lambda_.6} parent=5 // pred_check_branch
      %220 = sbr.rel (%p217) target = $region40
    $region39: #{_lambda_.6} parent=5 // pred_region
      %s221 = ssub.s32 %s13, 1
      %s222 = smul.u32 2, %s18
      %p223 = scmp.lt.s32.totalorder %s222, 7
      %s224 = scalar_select %p223, %s222, 7
      %s225 = smul.addr %s224, 4
      %s226 = scalar_lea.vmem %s0, %s225
      %p227 = pneg %p39
      %p228 = pneg %p36
      %p229 = pneg %p60
      %p230 = pneg %p57
      %p231 = pneg %p81
      %p232 = pneg %p78
      %p233 = pneg %p102
      %p234 = pneg %p99
      %p235 = pneg %p123
      %p236 = pneg %p120
      %p237 = pneg %p149
      %p238 = pneg %p146
      %s239 = smul.u32 2, %s18
      %p240 = scmp.lt.s32.totalorder %s239, 7
      %s241 = scalar_select %p240, %s239, 7
      %s242 = smul.addr %s241, 4
      %s243 = scalar_lea.vmem %s5, %s242
      %p244 = pneg %p175
      %p245 = pneg %p172
      %p246 = scmp.lt.s32.totalorder %s18, 3
      %s247 = scalar_select %p246, %s18, 3
      %s248 = smul.addr %s247, 8
      %s249 = scalar_lea.vmem %s6, %s248
      %s250 = smul.u32 2, %s18
      %p251 = scmp.lt.s32.totalorder %s250, 7
      %s252 = scalar_select %p251, %s250, 7
      %s253 = smul.addr %s252, 4
      %s254 = scalar_lea.vmem %s0, %s253
      %s255 = smul.u32 2, %s18
      %s256 = smul.u32 2, %s18
      %p257 = scmp.lt.s32.totalorder %s256, 7
      %s258 = scalar_select %p257, %s256, 7
      %s259 = smul.addr %s258, 4
      %s260 = scalar_lea.vmem %s5, %s259
      %s261 = smul.u32 2, %s18
      %p262 = scmp.lt.s32.totalorder %s18, 3
      %s263 = scalar_select %p262, %s18, 3
      %s264 = smul.addr %s263, 8
      %s265 = scalar_lea.vmem %s6, %s264
      %v267 = vld [vmem:[%s254] sm:$0xf]
      %v268 = vld [vmem:[%s254 + $0x4] sm:$0xf]
      %v269 = vunpack.c.l.bf16 %v267
      %v270 = vunpack.c.l.bf16 %v268
      %v271 = vld [vmem:[%s1] sm:$0x1]
      %v273 = vlaneseq
      %v274 = vshrl.u32 %v273, 7
      %v275 = vsub.s32 0, %v274
      %v276 = vrot.slane %v271, %v275
      %v278 = vmul.f32 %v269, %v276
      %v279 = vmul.f32 %v270, %v276
      %v280 = vld [vmem:[%s2] sm:$0x1]
      %v282 = vlaneseq
      %v283 = vshrl.u32 %v282, 7
      %v284 = vsub.s32 0, %v283
      %v285 = vrot.slane %v280, %v284
      %v287 = vadd.f32 %v278, %v285
      %v288 = vadd.f32 %v279, %v285
      %v289 = vmax.f32 %v287, 0.0
      %v290 = vmax.f32 %v288, 0.0
      %v291 = vpack.c.bf16 %v290, %v289
      %v292 = vld [vmem:[%s3] sm:$0xff]
      %v293 = vld [vmem:[%s3 + $0x8] sm:$0xf]
      %v294 = vld [vmem:[%s3 + $0xc] sm:$0xff]
      %v295 = vld [vmem:[%s3 + $0x14] sm:$0xf]
      %v296 = vld [vmem:[%s3 + $0x18] sm:$0xff]
      %v297 = vld [vmem:[%s3 + $0x20] sm:$0xf]
      %v298 = vld [vmem:[%s3 + $0x24] sm:$0xff]
      %v299 = vld [vmem:[%s3 + $0x2c] sm:$0xf]
      %v300 = vld [vmem:[%s3 + $0x30] sm:$0xff]
      %v301 = vld [vmem:[%s3 + $0x38] sm:$0xf]
      %v302 = vld [vmem:[%s3 + $0x3c] sm:$0xff]
      %v303 = vld [vmem:[%s3 + $0x44] sm:$0xf]
      %v304 = vld [vmem:[%s3 + $0x48] sm:$0xff]
      %v305 = vld [vmem:[%s3 + $0x50] sm:$0xf]
      %v306 = vld [vmem:[%s3 + $0x54] sm:$0xff]
      %v307 = vld [vmem:[%s3 + $0x5c] sm:$0xf]
      %v308 = vld [vmem:[%s3 + $0x60] sm:$0xff]
      %v309 = vld [vmem:[%s3 + $0x68] sm:$0xf]
      %v310 = vld [vmem:[%s3 + $0x6c] sm:$0xff]
      %v311 = vld [vmem:[%s3 + $0x74] sm:$0xf]
      %v312 = vld [vmem:[%s3 + $0x78] sm:$0xff]
      %v313 = vld [vmem:[%s3 + $0x80] sm:$0xf]
      %v314 = vld [vmem:[%s3 + $0x84] sm:$0xff]
      %v315 = vld [vmem:[%s3 + $0x8c] sm:$0xf]
      %v316 = vld [vmem:[%s3 + $0x90] sm:$0xff]
      %v317 = vld [vmem:[%s3 + $0x98] sm:$0xf]
      %v318 = vld [vmem:[%s3 + $0x9c] sm:$0xff]
      %v319 = vld [vmem:[%s3 + $0xa4] sm:$0xf]
      %v320 = vld [vmem:[%s3 + $0xa8] sm:$0xff]
      %v321 = vld [vmem:[%s3 + $0xb0] sm:$0xf]
      %v322 = vld [vmem:[%s3 + $0xb4] sm:$0xff]
      %v323 = vld [vmem:[%s3 + $0xbc] sm:$0xf]
      %v324 = vld [vmem:[%s4] sm:$0x7]
      %v326 = vlaneseq
      %v327 = vshrl.u32 %v326, 7
      %v328 = vsub.s32 0, %v327
      %v329 = vrot.slane %v324, %v328
      %v330 = vlaneseq
      %v331 = vshrl.u32 %v330, 7
      %v332 = vsub.s32 1, %v331
      %v333 = vrot.slane %v324, %v332
      %v334 = vlaneseq
      %v335 = vshrl.u32 %v334, 7
      %v336 = vsub.s32 2, %v335
      %v337 = vrot.slane %v324, %v336
      %v373 = vunpack.c.l.b16 %v292
      %v374 = vunpack.c.h.b16 %v292
      %v375 = vunpack.c.l.b16 %v293
      %v376 = vunpack.c.l.b16 %v294
      %v377 = vunpack.c.h.b16 %v294
      %v378 = vunpack.c.l.b16 %v295
      %v379 = vunpack.c.l.b16 %v296
      %v380 = vunpack.c.h.b16 %v296
      %v381 = vunpack.c.l.b16 %v297
      %v382 = vunpack.c.l.b16 %v298
      %v383 = vunpack.c.h.b16 %v298
      %v384 = vunpack.c.l.b16 %v299
      %v385 = vunpack.c.l.b16 %v300
      %v386 = vunpack.c.h.b16 %v300
      %v387 = vunpack.c.l.b16 %v301
      %v388 = vunpack.c.l.b16 %v302
      %v389 = vunpack.c.h.b16 %v302
      %v390 = vunpack.c.l.b16 %v303
      %v391 = vunpack.c.l.b16 %v304
      %v392 = vunpack.c.h.b16 %v304
      %v393 = vunpack.c.l.b16 %v305
      %v394 = vunpack.c.l.b16 %v306
      %v395 = vunpack.c.h.b16 %v306
      %v396 = vunpack.c.l.b16 %v307
      %v397 = vunpack.c.l.b16 %v308
      %v398 = vunpack.c.h.b16 %v308
      %v399 = vunpack.c.l.b16 %v309
      %v400 = vunpack.c.l.b16 %v310
      %v401 = vunpack.c.h.b16 %v310
      %v402 = vunpack.c.l.b16 %v311
      %v403 = vunpack.c.l.b16 %v312
      %v404 = vunpack.c.h.b16 %v312
      %v405 = vunpack.c.l.b16 %v313
      %v406 = vunpack.c.l.b16 %v314
      %v407 = vunpack.c.h.b16 %v314
      %v408 = vunpack.c.l.b16 %v315
      %v409 = vunpack.c.l.b16 %v316
      %v410 = vunpack.c.h.b16 %v316
      %v411 = vunpack.c.l.b16 %v317
      %v412 = vunpack.c.l.b16 %v318
      %v413 = vunpack.c.h.b16 %v318
      %v414 = vunpack.c.l.b16 %v319
      %v415 = vunpack.c.l.b16 %v320
      %v416 = vunpack.c.h.b16 %v320
      %v417 = vunpack.c.l.b16 %v321
      %v418 = vunpack.c.l.b16 %v322
      %v419 = vunpack.c.h.b16 %v322
      %v420 = vunpack.c.l.b16 %v323
      %v421 = vpack.c.b16 %v376, %v373
      %v422 = vpack.c.b16 %v377, %v374
      %v423 = vpack.c.b16 %v378, %v375
      %v424 = vpack.c.b16 %v382, %v379
      %v425 = vpack.c.b16 %v383, %v380
      %v426 = vpack.c.b16 %v384, %v381
      %v427 = vpack.c.b16 %v388, %v385
      %v428 = vpack.c.b16 %v389, %v386
      %v429 = vpack.c.b16 %v390, %v387
      %v430 = vpack.c.b16 %v394, %v391
      %v431 = vpack.c.b16 %v395, %v392
      %v432 = vpack.c.b16 %v396, %v393
      %v433 = vpack.c.b16 %v400, %v397
      %v434 = vpack.c.b16 %v401, %v398
      %v435 = vpack.c.b16 %v402, %v399
      %v436 = vpack.c.b16 %v406, %v403
      %v437 = vpack.c.b16 %v407, %v404
      %v438 = vpack.c.b16 %v408, %v405
      %v439 = vpack.c.b16 %v412, %v409
      %v440 = vpack.c.b16 %v413, %v410
      %v441 = vpack.c.b16 %v414, %v411
      %v442 = vpack.c.b16 %v418, %v415
      %v443 = vpack.c.b16 %v419, %v416
      %v444 = vpack.c.b16 %v420, %v417
      %469 = vmatprep.subr.bf16.mxu0 %v443
      %470 = vmatpush1.bf16.msra.mxu0 %v442
      %471 = vmatprep.subr.bf16.mxu0 %v440
      %472 = vmatpush1.bf16.msra.mxu0 %v439
      %473 = vmatprep.subr.bf16.mxu0 %v437
      %474 = vmatpush1.bf16.msra.mxu0 %v436
      %475 = vmatprep.subr.bf16.mxu0 %v434
      %476 = vmatpush1.bf16.msra.mxu0 %v433
      %477 = vmatprep.subr.bf16.mxu0 %v431
      %478 = vmatpush1.bf16.msra.mxu0 %v430
      %479 = vmatprep.subr.bf16.mxu0 %v428
      %480 = vmatpush1.bf16.msra.mxu0 %v427
      %481 = vmatprep.subr.bf16.mxu0 %v425
      %482 = vmatpush1.bf16.msra.mxu0 %v424
      %483 = vmatprep.subr.bf16.mxu0 %v422
      %484 = vmatpush1.bf16.msra.mxu0 %v421
      %485 = vmatprep.subr.bf16.mxu0 0
      %486 = vmatpush2.bf16.msra.mxu0 0
      %487 = vmatprep.subr.bf16.mxu0 0
      %488 = vmatpush2.bf16.msra.mxu0 0
      %489 = vmatprep.subr.bf16.mxu0 0
      %490 = vmatpush2.bf16.msra.mxu0 0
      %491 = vmatprep.subr.bf16.mxu0 0
      %492 = vmatpush2.bf16.msra.mxu0 0
      %493 = vmatprep.subr.bf16.mxu0 0
      %494 = vmatpush2.bf16.msra.mxu0 0
      %495 = vmatprep.subr.bf16.mxu0 0
      %496 = vmatpush2.bf16.msra.mxu0 0
      %497 = vmatprep.subr.bf16.mxu0 0
      %498 = vmatpush2.bf16.msra.mxu0 0
      %499 = vmatprep.subr.bf16.mxu0 0
      %500 = vmatpush2.bf16.msra.mxu0 0
      %501 = vmatprep.mubr.bf16.mxu0 0
      %502 = vmatmul.mubr.bf16.gmra.mxu0 %v291
      %v503 = vpop.f32.mrf.mxu0
      %v504 = vadd.f32 %v329, %v503
      %v505 = vpop.f32.mrf.mxu0
      %v506 = vadd.f32 %v333, %v505
      %v507 = vpop.f32.mrf.mxu0
      %v508 = vadd.f32 %v329, %v507
      %v509 = vpop.f32.mrf.mxu0
      %v510 = vadd.f32 %v333, %v509
      %511 = vdwg.mxu0
      %512 = vmatprep.subr.bf16.mxu0 0
      %513 = vmatpush1.bf16.msra.mxu0 %v444
      %514 = vmatprep.subr.bf16.mxu0 0
      %515 = vmatpush1.bf16.msra.mxu0 %v441
      %516 = vmatprep.subr.bf16.mxu0 0
      %517 = vmatpush1.bf16.msra.mxu0 %v438
      %518 = vmatprep.subr.bf16.mxu0 0
      %519 = vmatpush1.bf16.msra.mxu0 %v435
      %520 = vmatprep.subr.bf16.mxu0 0
      %521 = vmatpush1.bf16.msra.mxu0 %v432
      %522 = vmatprep.subr.bf16.mxu0 0
      %523 = vmatpush1.bf16.msra.mxu0 %v429
      %524 = vmatprep.subr.bf16.mxu0 0
      %525 = vmatpush1.bf16.msra.mxu0 %v426
      %526 = vmatprep.subr.bf16.mxu0 0
      %527 = vmatpush1.bf16.msra.mxu0 %v423
      %528 = vmatprep.subr.bf16.mxu0 0
      %529 = vmatpush2.bf16.msra.mxu0 0
      %530 = vmatprep.subr.bf16.mxu0 0
      %531 = vmatpush2.bf16.msra.mxu0 0
      %532 = vmatprep.subr.bf16.mxu0 0
      %533 = vmatpush2.bf16.msra.mxu0 0
      %534 = vmatprep.subr.bf16.mxu0 0
      %535 = vmatpush2.bf16.msra.mxu0 0
      %536 = vmatprep.subr.bf16.mxu0 0
      %537 = vmatpush2.bf16.msra.mxu0 0
      %538 = vmatprep.subr.bf16.mxu0 0
      %539 = vmatpush2.bf16.msra.mxu0 0
      %540 = vmatprep.subr.bf16.mxu0 0
      %541 = vmatpush2.bf16.msra.mxu0 0
      %542 = vmatprep.subr.bf16.mxu0 0
      %543 = vmatpush2.bf16.msra.mxu0 0
      %544 = vmatprep.mubr.bf16.mxu0 0
      %545 = vmatmul.mubr.bf16.gmra.mxu0 %v291
      %v546 = vpop.f32.mrf.mxu0
      %v547 = vadd.f32 %v337, %v546
      %v548 = vpop.f32.mrf.mxu0
      %v549 = vpop.f32.mrf.mxu0
      %v550 = vadd.f32 %v337, %v549
      %v551 = vpop.f32.mrf.mxu0
      %552 = vdwg.mxu0
      %v553 = vxor.u32 %v506, 2147483648
      %v554 = vxor.u32 %v510, 2147483648
      %v555 = vmul.f32 %v553, 1.442695
      %v556 = vpow.pop %v555
      %v557 = vmul.f32 %v554, 1.442695
      %v558 = vpow.pop %v557
      %v559 = vadd.f32 %v556, 1.0
      %v560 = vadd.f32 %v558, 1.0
      %v561 = vrcp.pop %v559
      %v562 = vmul.f32 1.0, %v561
      %v563 = vrcp.pop %v560
      %v564 = vmul.f32 1.0, %v563
      %v565 = vmul.f32 %v504, %v562
      %v566 = vmul.f32 %v508, %v564
      %v567 = vsub.f32 1.0, %v562
      %v568 = vsub.f32 1.0, %v564
      %v569 = vmul.f32 %v547, %v567
      %v570 = vmul.f32 %v550, %v568
      %v571 = vadd.f32 %v565, %v569
      %v572 = vadd.f32 %v566, %v570
      %v573 = vadd.f32 %v571, %v572
      %v574 = vrot.slane %v573, 4
      %v575 = vadd.f32 %v573, %v574
      %v576 = vrot.slane %v575, 2
      %v577 = vadd.f32 %v575, %v576
      %v578 = vrot.slane %v577, 1
      %v579 = vadd.f32 %v577, %v578
      %v580 = vmul.f32 %v571, %v571
      %v581 = vmul.f32 %v572, %v572
      %v582 = vadd.f32 %v580, %v581
      %v583 = vrot.slane %v582, 4
      %v584 = vadd.f32 %v582, %v583
      %v585 = vrot.slane %v584, 2
      %v586 = vadd.f32 %v584, %v585
      %v587 = vrot.slane %v586, 1
      %v588 = vadd.f32 %v586, %v587
      %vm589 = vcmask 1040384
      %v590 = vsel %vm589, %v579, %v588
      %vm591 = vcmask 1041408
      %v592 = vsel %vm591, %v590, 0.0
      %593 = vst [vmem:[%s265] sm:$0xff] %v592
      %v594 = vpack.c.bf16 %v572, %v571
      %v596 = vunpack.c.l.b16 %v594
      %v597 = vunpack.c.h.b16 %v594
      %v598 = vpack.c.b16 %v596, %v596
      %v599 = vpack.c.b16 %v597, %v597
      %602 = vst [vmem:[%s260] sm:$0xf] %v598
      %603 = vst [vmem:[%s260 + $0x4] sm:$0xf] %v599
      %s604 = smul.u32 2, %s18
      %p605 = scmp.lt.s32.totalorder %s604, 7
      %s606 = scalar_select %p605, %s604, 7
      %s607 = smul.addr %s606, 4
      %s608 = scalar_lea.vmem %s5, %s607
      %p609 = scmp.lt.s32.totalorder %s18, 3
      %s610 = scalar_select %p609, %s18, 3
      %s611 = smul.addr %s610, 8
      %s612 = scalar_lea.vmem %s6, %s611
      // Predicated region
      $region41: #{_lambda_.6} parent=39 // pred_check
        %p613 = pneg %p146
      $region42: #{_lambda_.6} parent=39 // pred_check_branch
        %615 = sbr.rel (%p613) target = $region44
      $region43: #{_lambda_.6} parent=39 // pred_region
        %s616 = smul.u32 2, %s18
      $region44: #{_lambda_.6} parent=39 // pred_fallthru
        _
      // Predicated region
      $region45: #{_lambda_.6} parent=39 // pred_check
        %p617 = pneg %p172
      $region46: #{_lambda_.6} parent=39 // pred_check_branch
        %619 = sbr.rel (%p617) target = $region48
      $region47: #{_lambda_.6} parent=39 // pred_region
        _
      $region48: #{_lambda_.6} parent=39 // pred_fallthru
        _
    $region40: #{_lambda_.6} parent=5 // pred_fallthru
      _
    %p620 = scmp.le.s32.totalorder 2, %s13
    // Predicated region
    $region49: #{_lambda_.6} parent=5 // pred_check
      %p621 = pneg %p620
    $region50: #{_lambda_.6} parent=5 // pred_check_branch
      %623 = sbr.rel (%p621) target = $region52
    $region51: #{_lambda_.6} parent=5 // pred_region
      %s624 = ssub.s32 %s13, 2
      // Predicated region
      $region53: #{_lambda_.6} parent=51 // pred_check
        %p625 = pneg %p152
      $region54: #{_lambda_.6} parent=51 // pred_check_branch
        %627 = sbr.rel (%p625) target = $region56
      $region55: #{_lambda_.6} parent=51 // pred_region
        %s628 = smul.u32 2, %s19
        %p629 = scmp.lt.s32.totalorder %s628, 7
        %s630 = scalar_select %p629, %s628, 7
        %s631 = smul.addr %s630, 4
        %s632 = scalar_lea.vmem %s5, %s631
      $region56: #{_lambda_.6} parent=51 // pred_fallthru
        _
      // Predicated region
      $region57: #{_lambda_.6} parent=51 // pred_check
        %p633 = pneg %p178
      $region58: #{_lambda_.6} parent=51 // pred_check_branch
        %635 = sbr.rel (%p633) target = $region60
      $region59: #{_lambda_.6} parent=51 // pred_region
        %p636 = scmp.lt.s32.totalorder %s19, 3
        %s637 = scalar_select %p636, %s19, 3
        %s638 = smul.addr %s637, 8
        %s639 = scalar_lea.vmem %s6, %s638
      $region60: #{_lambda_.6} parent=51 // pred_fallthru
        _
    $region52: #{_lambda_.6} parent=5 // pred_fallthru
      _
  $region6: #{_lambda_.6} parent=0 // loop_footer
    %s17 = sadd.s32 1, %s13
  $region7: #{_lambda_.6} parent=0 // loop_footer_branch
    %12 = sbr.rel target = $region3
  $region8: #{_lambda_.6} parent=0 // loop_exit
    _

</llo_original>
